<compile_context>
chip_gen: v5e
topology: v5e:2x2
jax: 0.10.0
libtpu: 0.0.40
codegen_flags: <defaults>
</compile_context>

<pallas_src>
import functools

import jax
import jax.numpy as jnp
from jax import lax
from jax.experimental import pallas as pl
from jax.experimental.pallas import tpu as pltpu

_UNROLL_MAX_T = 16  # fully unroll the serial loops only up to this seq length


def _tree_sum(terms):
    """Pairwise (log-depth) sum of a list of equal-shape arrays."""
    while len(terms) > 1:
        nxt = [terms[i] + terms[i + 1] for i in range(0, len(terms) - 1, 2)]
        if len(terms) % 2:
            nxt.append(terms[-1])
        terms = nxt
    return terms[0]


def _crf_map_kernel(x_ref, ebT_ref, mb_ref, trans_ref, start_ref, end_ref,
                    out_ref, *, small_l):
    """One batch tile per grid step (batch-on-lanes layout).

    x_ref      : (T, L, TB) f32  emission potentials; overwritten in place with
                                 the forward ("alpha") logits
    ebT_ref    : (L, L) f32      exp(transitions - mb).T   (ebT[j,k] = e^{t[k,j]-mb[j]})
    mb_ref     : (L, 1) f32      max(transitions, axis=0) as a column
    trans_ref  : (L, L) f32      transitions
    start_ref  : (L, 1) f32
    end_ref    : (L, 1) f32
    out_ref    : (T, TB) i32     decoded tag sequence (seq-major in the tile)
    """
    T, L, TB = x_ref.shape
    unrolled = T <= _UNROLL_MAX_T           # static: straight-line vs fori_loop

    mb = mb_ref[...]                        # (L, 1)
    start = start_ref[...]                  # (L, 1)
    end = end_ref[...]                      # (L, 1)

    def make_mix(m_ref):
        # Returns mix(rows) == m @ rows : (L, L) @ (L, TB) -> (L, TB).
        if small_l:
            # Hoist the constant-side lane broadcasts out of the T loops
            # (JAX does not CSE / hoist broadcast_in_dim inside fori_loop).
            cols = [jnp.broadcast_to(m_ref[:, k:k + 1], (L, TB))
                    for k in range(L)]

            def mix(rows):                  # VPU outer-product accumulation
                return _tree_sum([cols[k] * rows[k:k + 1, :]
                                  for k in range(L)])
        else:
            mat = m_ref[...]

            def mix(rows):                  # MXU path for larger label counts
                return jnp.dot(mat, rows, precision=lax.Precision.HIGHEST,
                               preferred_element_type=jnp.float32)
        return mix

    # ---------------- forward recursion (alphas stored in place in x) --------
    fwd_mix = make_mix(ebT_ref)

    def logmmexp(prev):
        # Stable logmmexp(prev, transitions) in (L, TB) orientation.
        ma = jnp.max(prev, axis=0, keepdims=True)        # (1, TB) sublane reduce
        ea = jnp.exp(prev - ma)                          # (L, TB)
        return ma + mb + jnp.log(fwd_mix(ea))            # (L, TB)

    alpha0 = x_ref[0] + start
    x_ref[0] = alpha0

    def fwd_step(i, prev):
        cur = x_ref[i] + logmmexp(prev)
        x_ref[i] = cur
        return cur

    if unrolled:
        last = alpha0
        for i in range(1, T):               # static indices, straight-line code
            last = fwd_step(i, last)
    else:
        last = lax.fori_loop(1, T, fwd_step, alpha0, unroll=4)

    last = last + end                       # end transitions only at step T-1
    # (alpha[T-1]+end is never re-read by the backward pass: no store needed)

    # ---------------- backward greedy decode ---------------------------------
    iota_sub = lax.broadcasted_iota(jnp.int32, (L, TB), 0)

    def argmax_onehot(v):
        # first-occurrence argmax over the label (sublane) axis
        m = jnp.max(v, axis=0, keepdims=True)                          # (1, TB)
        idx = jnp.min(jnp.where(v == m, iota_sub, L), axis=0, keepdims=True)
        onehot = (iota_sub == idx).astype(jnp.float32)                 # (L, TB)
        return idx, onehot

    bwd_mix = make_mix(trans_ref)           # defined here to keep live range short

    idx_last, oh = argmax_onehot(last)
    out_ref[pl.ds(T - 1, 1), :] = idx_last  # lane-dense full-row store

    def bwd_step(i, oh_next):
        # transitions[:, next_label] via exact one-hot column mix
        v = x_ref[i] + bwd_mix(oh_next)
        idx, oh_cur = argmax_onehot(v)
        out_ref[pl.ds(i, 1), :] = idx
        return oh_cur

    if unrolled:
        for i in range(T - 2, -1, -1):
            oh = bwd_step(i, oh)
    else:
        lax.fori_loop(0, T - 1, lambda s, o: bwd_step(T - 2 - s, o), oh,
                      unroll=4)


# ----------------------------- wrapper helpers --------------------------------
def _round_up(v, m):
    return -(-v // m) * m


def _block_vmem_bytes(tb, T, L):
    """(8,128)-padded VMEM bytes of one grid step's x + out blocks."""
    x_blk = T * _round_up(L, 8) * _round_up(tb, 128) * 4
    o_blk = _round_up(T, 8) * _round_up(tb, 128) * 4
    return x_blk + o_blk


def _const_vmem_bytes(L):
    two_d = _round_up(L, 8) * _round_up(L, 128) * 4          # ebT, transitions
    col = _round_up(L, 8) * 128 * 4                          # mb, start, end
    return 2 * (2 * two_d + 3 * col)                         # double-buffered


def _vmem_capacity_bytes():
    try:
        cap = getattr(pltpu.get_tpu_info(), "vmem_capacity_bytes", None)
        if cap:
            return int(cap)
    except Exception:
        pass
    return 64 << 20          # conservative fallback (v7x: 64 MiB / TensorCore)


def _vpu_mxu_crossover():
    # 128-wide-MXU chips (<= v5) break even with the VPU mix earlier than the
    # 256-wide MXUs on v6e / v7x (MXU push->pop latency sits on the serial
    # critical path of the recursion).
    try:
        kind = jax.devices()[0].device_kind.lower()
    except Exception:
        kind = ""
    return 16 if any(v in kind for v in ("v2", "v3", "v4", "v5")) else 32


def _pick_batch_tile(B, T, L, budget_bytes):
    """Largest lane-dense (128-multiple) proper divisor of B whose
    double-buffered x+out blocks fit the budget; falls back sensibly."""
    cands = sorted((d for d in range(128, B, 128) if B % d == 0), reverse=True)
    for tb in cands:                         # proper divisors -> >= 2 grid steps
        if 2 * _block_vmem_bytes(tb, T, L) <= budget_bytes:
            return tb
    if cands:
        return cands[-1]                     # nothing fits: smallest dense tile
    return B                                 # small batch: single tile


@jax.jit
def crf_map(x, transitions, start_transitions, end_transitions):
    """CRF.forward / CRF.map: x (B, T, L) f32 -> decoded tags (B, T) int32."""
    B, T, L = x.shape
    assert T >= 1, "sequence length must be >= 1"

    cap = _vmem_capacity_bytes()
    budget = min(cap // 4, 24 << 20)         # for the double-buffered blocks

    # Batch-on-lanes: kernel sees x as (T, L, B); pad awkward large batches to
    # a multiple of 128 lanes so tiles stay lane-dense and the grid has >= 2
    # steps (v7x megacore).  Padded columns are computed then discarded.
    B_pad = B if (B <= 128 or B % 128 == 0) else _round_up(B, 128)
    xt = jnp.transpose(x, (1, 2, 0))                         # (T, L, B)
    if B_pad != B:
        xt = jnp.pad(xt, ((0, 0), (0, 0), (0, B_pad - B)))

    TB = _pick_batch_tile(B_pad, T, L, budget)
    grid = (B_pad // TB,)

    # Per-call constants, hoisted out of the kernel.
    mb = jnp.max(transitions, axis=0)                        # (L,)
    ebT = jnp.exp(transitions - mb[None, :]).T               # (L, L)
    mb_col = mb.reshape(L, 1)
    start_col = start_transitions.reshape(L, 1)
    end_col = end_transitions.reshape(L, 1)

    needed = 2 * _block_vmem_bytes(TB, T, L) + _const_vmem_bytes(L)
    vmem_limit = min(needed + (8 << 20), cap - (12 << 20))
    vmem_limit = max(vmem_limit, needed + (2 << 20), 16 << 20)
    vmem_limit = int(min(vmem_limit, cap))

    kernel = functools.partial(_crf_map_kernel,
                               small_l=(L <= _vpu_mxu_crossover()))

    out = pl.pallas_call(
        kernel,
        grid=grid,
        out_shape=jax.ShapeDtypeStruct((T, B_pad), jnp.int32),
        in_specs=[
            pl.BlockSpec((T, L, TB), lambda b: (0, 0, b)),   # x, (T, L, B)
            pl.BlockSpec((L, L), lambda b: (0, 0)),          # exp(trans-mb).T
            pl.BlockSpec((L, 1), lambda b: (0, 0)),          # mb column
            pl.BlockSpec((L, L), lambda b: (0, 0)),          # transitions
            pl.BlockSpec((L, 1), lambda b: (0, 0)),          # start column
            pl.BlockSpec((L, 1), lambda b: (0, 0)),          # end column
        ],
        out_specs=pl.BlockSpec((T, TB), lambda b: (0, b)),
        compiler_params=pltpu.CompilerParams(
            dimension_semantics=("parallel",),
            vmem_limit_bytes=vmem_limit,
        ),
    )(xt, ebT, mb_col, transitions, start_col, end_col)

    # Tiny int32 (T, B_pad) -> (B, T); negligible next to the x read/transpose.
    return out[:, :B].T


# ----------------------- pure-JAX reference (torch semantics) ----------------
def _logmmexp_ref(a, b):
    ma = jnp.max(a, axis=-1, keepdims=True)
    mb = jnp.max(b, axis=0, keepdims=True)
    return ma + mb + jnp.log(jnp.dot(jnp.exp(a - ma), jnp.exp(b - mb),
                                     precision=lax.Precision.HIGHEST))


def crf_map_ref(x, transitions, start_transitions, end_transitions):
    B, T, L = x.shape
    logits = [None] * T
    logits[0] = x[:, 0, :] + start_transitions[None, :]
    for i in range(1, T):
        logits[i] = x[:, i, :] + _logmmexp_ref(logits[i - 1], transitions)
    logits[T - 1] = logits[T - 1] + end_transitions[None, :]
    seq = [None] * T
    seq[T - 1] = jnp.argmax(logits[T - 1], axis=1).astype(jnp.int32)
    for i in reversed(range(T - 1)):
        v = logits[i] + transitions.T[seq[i + 1], :]
        seq[i] = jnp.argmax(v, axis=1).astype(jnp.int32)
    return jnp.stack(seq, axis=1)


if __name__ == "__main__":
    n_labels = 8
    batch = 4
    seq_len = 10

    key = jax.random.PRNGKey(0)
    k_x, k_t, k_s, k_e = jax.random.split(key, 4)

    # Deterministic "parameters" (module __init__: 0.1 * randn)
    transitions = 0.1 * jax.random.normal(k_t, (n_labels, n_labels), jnp.float32)
    start_transitions = 0.1 * jax.random.normal(k_s, (n_labels,), jnp.float32)
    end_transitions = 0.1 * jax.random.normal(k_e, (n_labels,), jnp.float32)

    # Input emission potentials: float32[batch, seq, n_labels]
    x = jax.random.normal(k_x, (batch, seq_len, n_labels), jnp.float32)

    tags = crf_map(x, transitions, start_transitions, end_transitions)
    tags = jax.block_until_ready(tags)

    ref = crf_map_ref(x, transitions, start_transitions, end_transitions)
    assert tags.shape == (batch, seq_len), tags.shape
    assert tags.dtype == jnp.int32
    assert (tags == ref).all(), (tags, ref)

    print("KERNEL_OK")
</pallas_src>

<mosaic_0001>
module attributes {stable_mosaic.version = 11 : i64} {
  func.func @_crf_map_kernel(%arg0: i32, %arg1: memref<10x8x4xf32, #tpu.memory_space<vmem>>, %arg2: memref<8x8xf32, #tpu.memory_space<vmem>>, %arg3: memref<8x1xf32, #tpu.memory_space<vmem>>, %arg4: memref<8x8xf32, #tpu.memory_space<vmem>>, %arg5: memref<8x1xf32, #tpu.memory_space<vmem>>, %arg6: memref<8x1xf32, #tpu.memory_space<vmem>>, %arg7: memref<10x4xi32, #tpu.memory_space<vmem>>) attributes {dimension_semantics = [#tpu.dimension_semantics<parallel>], iteration_bounds = array<i64: 1>, scalar_prefetch = 0 : i64, scratch_operands = 0 : i64, tpu.core_type = #tpu.core_type<tc>, window_params = [{transform_indices = @transform_0, window_bounds = array<i64: 10, 8, 4>}, {pipeline_mode = #tpu.pipeline_mode<synchronous>, transform_indices = @transform_1, window_bounds = array<i64: 8, 8>}, {pipeline_mode = #tpu.pipeline_mode<synchronous>, transform_indices = @transform_2, window_bounds = array<i64: 8, 1>}, {pipeline_mode = #tpu.pipeline_mode<synchronous>, transform_indices = @transform_3, window_bounds = array<i64: 8, 8>}, {pipeline_mode = #tpu.pipeline_mode<synchronous>, transform_indices = @transform_4, window_bounds = array<i64: 8, 1>}, {pipeline_mode = #tpu.pipeline_mode<synchronous>, transform_indices = @transform_5, window_bounds = array<i64: 8, 1>}, {transform_indices = @transform_6, window_bounds = array<i64: 10, 4>}]} {
    %c0 = arith.constant 0 : index
    %c0_0 = arith.constant 0 : index
    %0 = vector.load %arg3[%c0, %c0_0] : memref<8x1xf32, #tpu.memory_space<vmem>>, vector<8x1xf32>
    %c0_1 = arith.constant 0 : index
    %c0_2 = arith.constant 0 : index
    %1 = vector.load %arg5[%c0_1, %c0_2] : memref<8x1xf32, #tpu.memory_space<vmem>>, vector<8x1xf32>
    %c0_3 = arith.constant 0 : index
    %c0_4 = arith.constant 0 : index
    %2 = vector.load %arg6[%c0_3, %c0_4] : memref<8x1xf32, #tpu.memory_space<vmem>>, vector<8x1xf32>
    %c0_5 = arith.constant 0 : index
    %c0_6 = arith.constant 0 : index
    %3 = vector.load %arg2[%c0_5, %c0_6] : memref<8x8xf32, #tpu.memory_space<vmem>>, vector<8x1xf32>
    %4 = vector.shape_cast %3 : vector<8x1xf32> to vector<8x1xf32>
    %5 = vector.broadcast %4 : vector<8x1xf32> to vector<8x4xf32>
    %c0_7 = arith.constant 0 : index
    %c1 = arith.constant 1 : index
    %6 = vector.load %arg2[%c0_7, %c1] : memref<8x8xf32, #tpu.memory_space<vmem>>, vector<8x1xf32>
    %7 = vector.shape_cast %6 : vector<8x1xf32> to vector<8x1xf32>
    %8 = vector.broadcast %7 : vector<8x1xf32> to vector<8x4xf32>
    %c0_8 = arith.constant 0 : index
    %c2 = arith.constant 2 : index
    %9 = vector.load %arg2[%c0_8, %c2] : memref<8x8xf32, #tpu.memory_space<vmem>>, vector<8x1xf32>
    %10 = vector.shape_cast %9 : vector<8x1xf32> to vector<8x1xf32>
    %11 = vector.broadcast %10 : vector<8x1xf32> to vector<8x4xf32>
    %c0_9 = arith.constant 0 : index
    %c3 = arith.constant 3 : index
    %12 = vector.load %arg2[%c0_9, %c3] : memref<8x8xf32, #tpu.memory_space<vmem>>, vector<8x1xf32>
    %13 = vector.shape_cast %12 : vector<8x1xf32> to vector<8x1xf32>
    %14 = vector.broadcast %13 : vector<8x1xf32> to vector<8x4xf32>
    %c0_10 = arith.constant 0 : index
    %c4 = arith.constant 4 : index
    %15 = vector.load %arg2[%c0_10, %c4] : memref<8x8xf32, #tpu.memory_space<vmem>>, vector<8x1xf32>
    %16 = vector.shape_cast %15 : vector<8x1xf32> to vector<8x1xf32>
    %17 = vector.broadcast %16 : vector<8x1xf32> to vector<8x4xf32>
    %c0_11 = arith.constant 0 : index
    %c5 = arith.constant 5 : index
    %18 = vector.load %arg2[%c0_11, %c5] : memref<8x8xf32, #tpu.memory_space<vmem>>, vector<8x1xf32>
    %19 = vector.shape_cast %18 : vector<8x1xf32> to vector<8x1xf32>
    %20 = vector.broadcast %19 : vector<8x1xf32> to vector<8x4xf32>
    %c0_12 = arith.constant 0 : index
    %c6 = arith.constant 6 : index
    %21 = vector.load %arg2[%c0_12, %c6] : memref<8x8xf32, #tpu.memory_space<vmem>>, vector<8x1xf32>
    %22 = vector.shape_cast %21 : vector<8x1xf32> to vector<8x1xf32>
    %23 = vector.broadcast %22 : vector<8x1xf32> to vector<8x4xf32>
    %c0_13 = arith.constant 0 : index
    %c7 = arith.constant 7 : index
    %24 = vector.load %arg2[%c0_13, %c7] : memref<8x8xf32, #tpu.memory_space<vmem>>, vector<8x1xf32>
    %25 = vector.shape_cast %24 : vector<8x1xf32> to vector<8x1xf32>
    %26 = vector.broadcast %25 : vector<8x1xf32> to vector<8x4xf32>
    %c0_14 = arith.constant 0 : index
    %c0_15 = arith.constant 0 : index
    %c0_16 = arith.constant 0 : index
    %27 = vector.load %arg1[%c0_14, %c0_15, %c0_16] : memref<10x8x4xf32, #tpu.memory_space<vmem>>, vector<1x8x4xf32>
    %28 = vector.shape_cast %27 : vector<1x8x4xf32> to vector<8x4xf32>
    %29 = vector.broadcast %1 : vector<8x1xf32> to vector<8x4xf32>
    %30 = arith.addf %28, %29 : vector<8x4xf32>
    %c0_17 = arith.constant 0 : index
    %c0_18 = arith.constant 0 : index
    %c0_19 = arith.constant 0 : index
    %31 = vector.load %arg1[%c0_17, %c0_18, %c0_19] : memref<10x8x4xf32, #tpu.memory_space<vmem>>, vector<1x8x4xf32>
    %32 = vector.shape_cast %31 : vector<1x8x4xf32> to vector<8x4xf32>
    %33 = vector.shape_cast %30 : vector<8x4xf32> to vector<1x8x4xf32>
    tpu.vector_store %arg1[%c0_17, %c0_18, %c0_19], %33 {strides = array<i32>} : memref<10x8x4xf32, #tpu.memory_space<vmem>>, vector<1x8x4xf32>,
    %c1_20 = arith.constant 1 : index
    %c0_21 = arith.constant 0 : index
    %c0_22 = arith.constant 0 : index
    %34 = vector.load %arg1[%c1_20, %c0_21, %c0_22] : memref<10x8x4xf32, #tpu.memory_space<vmem>>, vector<1x8x4xf32>
    %35 = vector.shape_cast %34 : vector<1x8x4xf32> to vector<8x4xf32>
    %cst = arith.constant dense<0xFF800000> : vector<4xf32>
    %36 = vector.multi_reduction <maximumf>, %30, %cst [0] : vector<8x4xf32> to vector<4xf32>
    %37 = vector.shape_cast %36 : vector<4xf32> to vector<1x4xf32>
    %38 = vector.broadcast %37 : vector<1x4xf32> to vector<8x4xf32>
    %39 = arith.subf %30, %38 : vector<8x4xf32>
    %40 = math.exp %39 : vector<8x4xf32>
    %41 = vector.broadcast %37 : vector<1x4xf32> to vector<8x4xf32>
    %42 = vector.broadcast %0 : vector<8x1xf32> to vector<8x4xf32>
    %43 = arith.addf %41, %42 : vector<8x4xf32>
    %44 = vector.extract_strided_slice %40 {offsets = [0, 0], sizes = [1, 4], strides = [1, 1]} : vector<8x4xf32> to vector<1x4xf32>
    %45 = vector.broadcast %44 : vector<1x4xf32> to vector<8x4xf32>
    %46 = arith.mulf %5, %45 : vector<8x4xf32>
    %47 = vector.extract_strided_slice %40 {offsets = [1, 0], sizes = [1, 4], strides = [1, 1]} : vector<8x4xf32> to vector<1x4xf32>
    %48 = vector.broadcast %47 : vector<1x4xf32> to vector<8x4xf32>
    %49 = arith.mulf %8, %48 : vector<8x4xf32>
    %50 = vector.extract_strided_slice %40 {offsets = [2, 0], sizes = [1, 4], strides = [1, 1]} : vector<8x4xf32> to vector<1x4xf32>
    %51 = vector.broadcast %50 : vector<1x4xf32> to vector<8x4xf32>
    %52 = arith.mulf %11, %51 : vector<8x4xf32>
    %53 = vector.extract_strided_slice %40 {offsets = [3, 0], sizes = [1, 4], strides = [1, 1]} : vector<8x4xf32> to vector<1x4xf32>
    %54 = vector.broadcast %53 : vector<1x4xf32> to vector<8x4xf32>
    %55 = arith.mulf %14, %54 : vector<8x4xf32>
    %56 = vector.extract_strided_slice %40 {offsets = [4, 0], sizes = [1, 4], strides = [1, 1]} : vector<8x4xf32> to vector<1x4xf32>
    %57 = vector.broadcast %56 : vector<1x4xf32> to vector<8x4xf32>
    %58 = arith.mulf %17, %57 : vector<8x4xf32>
    %59 = vector.extract_strided_slice %40 {offsets = [5, 0], sizes = [1, 4], strides = [1, 1]} : vector<8x4xf32> to vector<1x4xf32>
    %60 = vector.broadcast %59 : vector<1x4xf32> to vector<8x4xf32>
    %61 = arith.mulf %20, %60 : vector<8x4xf32>
    %62 = vector.extract_strided_slice %40 {offsets = [6, 0], sizes = [1, 4], strides = [1, 1]} : vector<8x4xf32> to vector<1x4xf32>
    %63 = vector.broadcast %62 : vector<1x4xf32> to vector<8x4xf32>
    %64 = arith.mulf %23, %63 : vector<8x4xf32>
    %65 = vector.extract_strided_slice %40 {offsets = [7, 0], sizes = [1, 4], strides = [1, 1]} : vector<8x4xf32> to vector<1x4xf32>
    %66 = vector.broadcast %65 : vector<1x4xf32> to vector<8x4xf32>
    %67 = arith.mulf %26, %66 : vector<8x4xf32>
    %68 = arith.addf %46, %49 : vector<8x4xf32>
    %69 = arith.addf %52, %55 : vector<8x4xf32>
    %70 = arith.addf %58, %61 : vector<8x4xf32>
    %71 = arith.addf %64, %67 : vector<8x4xf32>
    %72 = arith.addf %68, %69 : vector<8x4xf32>
    %73 = arith.addf %70, %71 : vector<8x4xf32>
    %74 = arith.addf %72, %73 : vector<8x4xf32>
    %75 = math.log %74 : vector<8x4xf32>
    %76 = arith.addf %43, %75 : vector<8x4xf32>
    %77 = arith.addf %35, %76 : vector<8x4xf32>
    %c1_23 = arith.constant 1 : index
    %c0_24 = arith.constant 0 : index
    %c0_25 = arith.constant 0 : index
    %78 = vector.load %arg1[%c1_23, %c0_24, %c0_25] : memref<10x8x4xf32, #tpu.memory_space<vmem>>, vector<1x8x4xf32>
    %79 = vector.shape_cast %78 : vector<1x8x4xf32> to vector<8x4xf32>
    %80 = vector.shape_cast %77 : vector<8x4xf32> to vector<1x8x4xf32>
    tpu.vector_store %arg1[%c1_23, %c0_24, %c0_25], %80 {strides = array<i32>} : memref<10x8x4xf32, #tpu.memory_space<vmem>>, vector<1x8x4xf32>,
    %c2_26 = arith.constant 2 : index
    %c0_27 = arith.constant 0 : index
    %c0_28 = arith.constant 0 : index
    %81 = vector.load %arg1[%c2_26, %c0_27, %c0_28] : memref<10x8x4xf32, #tpu.memory_space<vmem>>, vector<1x8x4xf32>
    %82 = vector.shape_cast %81 : vector<1x8x4xf32> to vector<8x4xf32>
    %cst_29 = arith.constant dense<0xFF800000> : vector<4xf32>
    %83 = vector.multi_reduction <maximumf>, %77, %cst_29 [0] : vector<8x4xf32> to vector<4xf32>
    %84 = vector.shape_cast %83 : vector<4xf32> to vector<1x4xf32>
    %85 = vector.broadcast %84 : vector<1x4xf32> to vector<8x4xf32>
    %86 = arith.subf %77, %85 : vector<8x4xf32>
    %87 = math.exp %86 : vector<8x4xf32>
    %88 = vector.broadcast %84 : vector<1x4xf32> to vector<8x4xf32>
    %89 = vector.broadcast %0 : vector<8x1xf32> to vector<8x4xf32>
    %90 = arith.addf %88, %89 : vector<8x4xf32>
    %91 = vector.extract_strided_slice %87 {offsets = [0, 0], sizes = [1, 4], strides = [1, 1]} : vector<8x4xf32> to vector<1x4xf32>
    %92 = vector.broadcast %91 : vector<1x4xf32> to vector<8x4xf32>
    %93 = arith.mulf %5, %92 : vector<8x4xf32>
    %94 = vector.extract_strided_slice %87 {offsets = [1, 0], sizes = [1, 4], strides = [1, 1]} : vector<8x4xf32> to vector<1x4xf32>
    %95 = vector.broadcast %94 : vector<1x4xf32> to vector<8x4xf32>
    %96 = arith.mulf %8, %95 : vector<8x4xf32>
    %97 = vector.extract_strided_slice %87 {offsets = [2, 0], sizes = [1, 4], strides = [1, 1]} : vector<8x4xf32> to vector<1x4xf32>
    %98 = vector.broadcast %97 : vector<1x4xf32> to vector<8x4xf32>
    %99 = arith.mulf %11, %98 : vector<8x4xf32>
    %100 = vector.extract_strided_slice %87 {offsets = [3, 0], sizes = [1, 4], strides = [1, 1]} : vector<8x4xf32> to vector<1x4xf32>
    %101 = vector.broadcast %100 : vector<1x4xf32> to vector<8x4xf32>
    %102 = arith.mulf %14, %101 : vector<8x4xf32>
    %103 = vector.extract_strided_slice %87 {offsets = [4, 0], sizes = [1, 4], strides = [1, 1]} : vector<8x4xf32> to vector<1x4xf32>
    %104 = vector.broadcast %103 : vector<1x4xf32> to vector<8x4xf32>
    %105 = arith.mulf %17, %104 : vector<8x4xf32>
    %106 = vector.extract_strided_slice %87 {offsets = [5, 0], sizes = [1, 4], strides = [1, 1]} : vector<8x4xf32> to vector<1x4xf32>
    %107 = vector.broadcast %106 : vector<1x4xf32> to vector<8x4xf32>
    %108 = arith.mulf %20, %107 : vector<8x4xf32>
    %109 = vector.extract_strided_slice %87 {offsets = [6, 0], sizes = [1, 4], strides = [1, 1]} : vector<8x4xf32> to vector<1x4xf32>
    %110 = vector.broadcast %109 : vector<1x4xf32> to vector<8x4xf32>
    %111 = arith.mulf %23, %110 : vector<8x4xf32>
    %112 = vector.extract_strided_slice %87 {offsets = [7, 0], sizes = [1, 4], strides = [1, 1]} : vector<8x4xf32> to vector<1x4xf32>
    %113 = vector.broadcast %112 : vector<1x4xf32> to vector<8x4xf32>
    %114 = arith.mulf %26, %113 : vector<8x4xf32>
    %115 = arith.addf %93, %96 : vector<8x4xf32>
    %116 = arith.addf %99, %102 : vector<8x4xf32>
    %117 = arith.addf %105, %108 : vector<8x4xf32>
    %118 = arith.addf %111, %114 : vector<8x4xf32>
    %119 = arith.addf %115, %116 : vector<8x4xf32>
    %120 = arith.addf %117, %118 : vector<8x4xf32>
    %121 = arith.addf %119, %120 : vector<8x4xf32>
    %122 = math.log %121 : vector<8x4xf32>
    %123 = arith.addf %90, %122 : vector<8x4xf32>
    %124 = arith.addf %82, %123 : vector<8x4xf32>
    %c2_30 = arith.constant 2 : index
    %c0_31 = arith.constant 0 : index
    %c0_32 = arith.constant 0 : index
    %125 = vector.load %arg1[%c2_30, %c0_31, %c0_32] : memref<10x8x4xf32, #tpu.memory_space<vmem>>, vector<1x8x4xf32>
    %126 = vector.shape_cast %125 : vector<1x8x4xf32> to vector<8x4xf32>
    %127 = vector.shape_cast %124 : vector<8x4xf32> to vector<1x8x4xf32>
    tpu.vector_store %arg1[%c2_30, %c0_31, %c0_32], %127 {strides = array<i32>} : memref<10x8x4xf32, #tpu.memory_space<vmem>>, vector<1x8x4xf32>,
    %c3_33 = arith.constant 3 : index
    %c0_34 = arith.constant 0 : index
    %c0_35 = arith.constant 0 : index
    %128 = vector.load %arg1[%c3_33, %c0_34, %c0_35] : memref<10x8x4xf32, #tpu.memory_space<vmem>>, vector<1x8x4xf32>
    %129 = vector.shape_cast %128 : vector<1x8x4xf32> to vector<8x4xf32>
    %cst_36 = arith.constant dense<0xFF800000> : vector<4xf32>
    %130 = vector.multi_reduction <maximumf>, %124, %cst_36 [0] : vector<8x4xf32> to vector<4xf32>
    %131 = vector.shape_cast %130 : vector<4xf32> to vector<1x4xf32>
    %132 = vector.broadcast %131 : vector<1x4xf32> to vector<8x4xf32>
    %133 = arith.subf %124, %132 : vector<8x4xf32>
    %134 = math.exp %133 : vector<8x4xf32>
    %135 = vector.broadcast %131 : vector<1x4xf32> to vector<8x4xf32>
    %136 = vector.broadcast %0 : vector<8x1xf32> to vector<8x4xf32>
    %137 = arith.addf %135, %136 : vector<8x4xf32>
    %138 = vector.extract_strided_slice %134 {offsets = [0, 0], sizes = [1, 4], strides = [1, 1]} : vector<8x4xf32> to vector<1x4xf32>
    %139 = vector.broadcast %138 : vector<1x4xf32> to vector<8x4xf32>
    %140 = arith.mulf %5, %139 : vector<8x4xf32>
    %141 = vector.extract_strided_slice %134 {offsets = [1, 0], sizes = [1, 4], strides = [1, 1]} : vector<8x4xf32> to vector<1x4xf32>
    %142 = vector.broadcast %141 : vector<1x4xf32> to vector<8x4xf32>
    %143 = arith.mulf %8, %142 : vector<8x4xf32>
    %144 = vector.extract_strided_slice %134 {offsets = [2, 0], sizes = [1, 4], strides = [1, 1]} : vector<8x4xf32> to vector<1x4xf32>
    %145 = vector.broadcast %144 : vector<1x4xf32> to vector<8x4xf32>
    %146 = arith.mulf %11, %145 : vector<8x4xf32>
    %147 = vector.extract_strided_slice %134 {offsets = [3, 0], sizes = [1, 4], strides = [1, 1]} : vector<8x4xf32> to vector<1x4xf32>
    %148 = vector.broadcast %147 : vector<1x4xf32> to vector<8x4xf32>
    %149 = arith.mulf %14, %148 : vector<8x4xf32>
    %150 = vector.extract_strided_slice %134 {offsets = [4, 0], sizes = [1, 4], strides = [1, 1]} : vector<8x4xf32> to vector<1x4xf32>
    %151 = vector.broadcast %150 : vector<1x4xf32> to vector<8x4xf32>
    %152 = arith.mulf %17, %151 : vector<8x4xf32>
    %153 = vector.extract_strided_slice %134 {offsets = [5, 0], sizes = [1, 4], strides = [1, 1]} : vector<8x4xf32> to vector<1x4xf32>
    %154 = vector.broadcast %153 : vector<1x4xf32> to vector<8x4xf32>
    %155 = arith.mulf %20, %154 : vector<8x4xf32>
    %156 = vector.extract_strided_slice %134 {offsets = [6, 0], sizes = [1, 4], strides = [1, 1]} : vector<8x4xf32> to vector<1x4xf32>
    %157 = vector.broadcast %156 : vector<1x4xf32> to vector<8x4xf32>
    %158 = arith.mulf %23, %157 : vector<8x4xf32>
    %159 = vector.extract_strided_slice %134 {offsets = [7, 0], sizes = [1, 4], strides = [1, 1]} : vector<8x4xf32> to vector<1x4xf32>
    %160 = vector.broadcast %159 : vector<1x4xf32> to vector<8x4xf32>
    %161 = arith.mulf %26, %160 : vector<8x4xf32>
    %162 = arith.addf %140, %143 : vector<8x4xf32>
    %163 = arith.addf %146, %149 : vector<8x4xf32>
    %164 = arith.addf %152, %155 : vector<8x4xf32>
    %165 = arith.addf %158, %161 : vector<8x4xf32>
    %166 = arith.addf %162, %163 : vector<8x4xf32>
    %167 = arith.addf %164, %165 : vector<8x4xf32>
    %168 = arith.addf %166, %167 : vector<8x4xf32>
    %169 = math.log %168 : vector<8x4xf32>
    %170 = arith.addf %137, %169 : vector<8x4xf32>
    %171 = arith.addf %129, %170 : vector<8x4xf32>
    %c3_37 = arith.constant 3 : index
    %c0_38 = arith.constant 0 : index
    %c0_39 = arith.constant 0 : index
    %172 = vector.load %arg1[%c3_37, %c0_38, %c0_39] : memref<10x8x4xf32, #tpu.memory_space<vmem>>, vector<1x8x4xf32>
    %173 = vector.shape_cast %172 : vector<1x8x4xf32> to vector<8x4xf32>
    %174 = vector.shape_cast %171 : vector<8x4xf32> to vector<1x8x4xf32>
    tpu.vector_store %arg1[%c3_37, %c0_38, %c0_39], %174 {strides = array<i32>} : memref<10x8x4xf32, #tpu.memory_space<vmem>>, vector<1x8x4xf32>,
    %c4_40 = arith.constant 4 : index
    %c0_41 = arith.constant 0 : index
    %c0_42 = arith.constant 0 : index
    %175 = vector.load %arg1[%c4_40, %c0_41, %c0_42] : memref<10x8x4xf32, #tpu.memory_space<vmem>>, vector<1x8x4xf32>
    %176 = vector.shape_cast %175 : vector<1x8x4xf32> to vector<8x4xf32>
    %cst_43 = arith.constant dense<0xFF800000> : vector<4xf32>
    %177 = vector.multi_reduction <maximumf>, %171, %cst_43 [0] : vector<8x4xf32> to vector<4xf32>
    %178 = vector.shape_cast %177 : vector<4xf32> to vector<1x4xf32>
    %179 = vector.broadcast %178 : vector<1x4xf32> to vector<8x4xf32>
    %180 = arith.subf %171, %179 : vector<8x4xf32>
    %181 = math.exp %180 : vector<8x4xf32>
    %182 = vector.broadcast %178 : vector<1x4xf32> to vector<8x4xf32>
    %183 = vector.broadcast %0 : vector<8x1xf32> to vector<8x4xf32>
    %184 = arith.addf %182, %183 : vector<8x4xf32>
    %185 = vector.extract_strided_slice %181 {offsets = [0, 0], sizes = [1, 4], strides = [1, 1]} : vector<8x4xf32> to vector<1x4xf32>
    %186 = vector.broadcast %185 : vector<1x4xf32> to vector<8x4xf32>
    %187 = arith.mulf %5, %186 : vector<8x4xf32>
    %188 = vector.extract_strided_slice %181 {offsets = [1, 0], sizes = [1, 4], strides = [1, 1]} : vector<8x4xf32> to vector<1x4xf32>
    %189 = vector.broadcast %188 : vector<1x4xf32> to vector<8x4xf32>
    %190 = arith.mulf %8, %189 : vector<8x4xf32>
    %191 = vector.extract_strided_slice %181 {offsets = [2, 0], sizes = [1, 4], strides = [1, 1]} : vector<8x4xf32> to vector<1x4xf32>
    %192 = vector.broadcast %191 : vector<1x4xf32> to vector<8x4xf32>
    %193 = arith.mulf %11, %192 : vector<8x4xf32>
    %194 = vector.extract_strided_slice %181 {offsets = [3, 0], sizes = [1, 4], strides = [1, 1]} : vector<8x4xf32> to vector<1x4xf32>
    %195 = vector.broadcast %194 : vector<1x4xf32> to vector<8x4xf32>
    %196 = arith.mulf %14, %195 : vector<8x4xf32>
    %197 = vector.extract_strided_slice %181 {offsets = [4, 0], sizes = [1, 4], strides = [1, 1]} : vector<8x4xf32> to vector<1x4xf32>
    %198 = vector.broadcast %197 : vector<1x4xf32> to vector<8x4xf32>
    %199 = arith.mulf %17, %198 : vector<8x4xf32>
    %200 = vector.extract_strided_slice %181 {offsets = [5, 0], sizes = [1, 4], strides = [1, 1]} : vector<8x4xf32> to vector<1x4xf32>
    %201 = vector.broadcast %200 : vector<1x4xf32> to vector<8x4xf32>
    %202 = arith.mulf %20, %201 : vector<8x4xf32>
    %203 = vector.extract_strided_slice %181 {offsets = [6, 0], sizes = [1, 4], strides = [1, 1]} : vector<8x4xf32> to vector<1x4xf32>
    %204 = vector.broadcast %203 : vector<1x4xf32> to vector<8x4xf32>
    %205 = arith.mulf %23, %204 : vector<8x4xf32>
    %206 = vector.extract_strided_slice %181 {offsets = [7, 0], sizes = [1, 4], strides = [1, 1]} : vector<8x4xf32> to vector<1x4xf32>
    %207 = vector.broadcast %206 : vector<1x4xf32> to vector<8x4xf32>
    %208 = arith.mulf %26, %207 : vector<8x4xf32>
    %209 = arith.addf %187, %190 : vector<8x4xf32>
    %210 = arith.addf %193, %196 : vector<8x4xf32>
    %211 = arith.addf %199, %202 : vector<8x4xf32>
    %212 = arith.addf %205, %208 : vector<8x4xf32>
    %213 = arith.addf %209, %210 : vector<8x4xf32>
    %214 = arith.addf %211, %212 : vector<8x4xf32>
    %215 = arith.addf %213, %214 : vector<8x4xf32>
    %216 = math.log %215 : vector<8x4xf32>
    %217 = arith.addf %184, %216 : vector<8x4xf32>
    %218 = arith.addf %176, %217 : vector<8x4xf32>
    %c4_44 = arith.constant 4 : index
    %c0_45 = arith.constant 0 : index
    %c0_46 = arith.constant 0 : index
    %219 = vector.load %arg1[%c4_44, %c0_45, %c0_46] : memref<10x8x4xf32, #tpu.memory_space<vmem>>, vector<1x8x4xf32>
    %220 = vector.shape_cast %219 : vector<1x8x4xf32> to vector<8x4xf32>
    %221 = vector.shape_cast %218 : vector<8x4xf32> to vector<1x8x4xf32>
    tpu.vector_store %arg1[%c4_44, %c0_45, %c0_46], %221 {strides = array<i32>} : memref<10x8x4xf32, #tpu.memory_space<vmem>>, vector<1x8x4xf32>,
    %c5_47 = arith.constant 5 : index
    %c0_48 = arith.constant 0 : index
    %c0_49 = arith.constant 0 : index
    %222 = vector.load %arg1[%c5_47, %c0_48, %c0_49] : memref<10x8x4xf32, #tpu.memory_space<vmem>>, vector<1x8x4xf32>
    %223 = vector.shape_cast %222 : vector<1x8x4xf32> to vector<8x4xf32>
    %cst_50 = arith.constant dense<0xFF800000> : vector<4xf32>
    %224 = vector.multi_reduction <maximumf>, %218, %cst_50 [0] : vector<8x4xf32> to vector<4xf32>
    %225 = vector.shape_cast %224 : vector<4xf32> to vector<1x4xf32>
    %226 = vector.broadcast %225 : vector<1x4xf32> to vector<8x4xf32>
    %227 = arith.subf %218, %226 : vector<8x4xf32>
    %228 = math.exp %227 : vector<8x4xf32>
    %229 = vector.broadcast %225 : vector<1x4xf32> to vector<8x4xf32>
    %230 = vector.broadcast %0 : vector<8x1xf32> to vector<8x4xf32>
    %231 = arith.addf %229, %230 : vector<8x4xf32>
    %232 = vector.extract_strided_slice %228 {offsets = [0, 0], sizes = [1, 4], strides = [1, 1]} : vector<8x4xf32> to vector<1x4xf32>
    %233 = vector.broadcast %232 : vector<1x4xf32> to vector<8x4xf32>
    %234 = arith.mulf %5, %233 : vector<8x4xf32>
    %235 = vector.extract_strided_slice %228 {offsets = [1, 0], sizes = [1, 4], strides = [1, 1]} : vector<8x4xf32> to vector<1x4xf32>
    %236 = vector.broadcast %235 : vector<1x4xf32> to vector<8x4xf32>
    %237 = arith.mulf %8, %236 : vector<8x4xf32>
    %238 = vector.extract_strided_slice %228 {offsets = [2, 0], sizes = [1, 4], strides = [1, 1]} : vector<8x4xf32> to vector<1x4xf32>
    %239 = vector.broadcast %238 : vector<1x4xf32> to vector<8x4xf32>
    %240 = arith.mulf %11, %239 : vector<8x4xf32>
    %241 = vector.extract_strided_slice %228 {offsets = [3, 0], sizes = [1, 4], strides = [1, 1]} : vector<8x4xf32> to vector<1x4xf32>
    %242 = vector.broadcast %241 : vector<1x4xf32> to vector<8x4xf32>
    %243 = arith.mulf %14, %242 : vector<8x4xf32>
    %244 = vector.extract_strided_slice %228 {offsets = [4, 0], sizes = [1, 4], strides = [1, 1]} : vector<8x4xf32> to vector<1x4xf32>
    %245 = vector.broadcast %244 : vector<1x4xf32> to vector<8x4xf32>
    %246 = arith.mulf %17, %245 : vector<8x4xf32>
    %247 = vector.extract_strided_slice %228 {offsets = [5, 0], sizes = [1, 4], strides = [1, 1]} : vector<8x4xf32> to vector<1x4xf32>
    %248 = vector.broadcast %247 : vector<1x4xf32> to vector<8x4xf32>
    %249 = arith.mulf %20, %248 : vector<8x4xf32>
    %250 = vector.extract_strided_slice %228 {offsets = [6, 0], sizes = [1, 4], strides = [1, 1]} : vector<8x4xf32> to vector<1x4xf32>
    %251 = vector.broadcast %250 : vector<1x4xf32> to vector<8x4xf32>
    %252 = arith.mulf %23, %251 : vector<8x4xf32>
    %253 = vector.extract_strided_slice %228 {offsets = [7, 0], sizes = [1, 4], strides = [1, 1]} : vector<8x4xf32> to vector<1x4xf32>
    %254 = vector.broadcast %253 : vector<1x4xf32> to vector<8x4xf32>
    %255 = arith.mulf %26, %254 : vector<8x4xf32>
    %256 = arith.addf %234, %237 : vector<8x4xf32>
    %257 = arith.addf %240, %243 : vector<8x4xf32>
    %258 = arith.addf %246, %249 : vector<8x4xf32>
    %259 = arith.addf %252, %255 : vector<8x4xf32>
    %260 = arith.addf %256, %257 : vector<8x4xf32>
    %261 = arith.addf %258, %259 : vector<8x4xf32>
    %262 = arith.addf %260, %261 : vector<8x4xf32>
    %263 = math.log %262 : vector<8x4xf32>
    %264 = arith.addf %231, %263 : vector<8x4xf32>
    %265 = arith.addf %223, %264 : vector<8x4xf32>
    %c5_51 = arith.constant 5 : index
    %c0_52 = arith.constant 0 : index
    %c0_53 = arith.constant 0 : index
    %266 = vector.load %arg1[%c5_51, %c0_52, %c0_53] : memref<10x8x4xf32, #tpu.memory_space<vmem>>, vector<1x8x4xf32>
    %267 = vector.shape_cast %266 : vector<1x8x4xf32> to vector<8x4xf32>
    %268 = vector.shape_cast %265 : vector<8x4xf32> to vector<1x8x4xf32>
    tpu.vector_store %arg1[%c5_51, %c0_52, %c0_53], %268 {strides = array<i32>} : memref<10x8x4xf32, #tpu.memory_space<vmem>>, vector<1x8x4xf32>,
    %c6_54 = arith.constant 6 : index
    %c0_55 = arith.constant 0 : index
    %c0_56 = arith.constant 0 : index
    %269 = vector.load %arg1[%c6_54, %c0_55, %c0_56] : memref<10x8x4xf32, #tpu.memory_space<vmem>>, vector<1x8x4xf32>
    %270 = vector.shape_cast %269 : vector<1x8x4xf32> to vector<8x4xf32>
    %cst_57 = arith.constant dense<0xFF800000> : vector<4xf32>
    %271 = vector.multi_reduction <maximumf>, %265, %cst_57 [0] : vector<8x4xf32> to vector<4xf32>
    %272 = vector.shape_cast %271 : vector<4xf32> to vector<1x4xf32>
    %273 = vector.broadcast %272 : vector<1x4xf32> to vector<8x4xf32>
    %274 = arith.subf %265, %273 : vector<8x4xf32>
    %275 = math.exp %274 : vector<8x4xf32>
    %276 = vector.broadcast %272 : vector<1x4xf32> to vector<8x4xf32>
    %277 = vector.broadcast %0 : vector<8x1xf32> to vector<8x4xf32>
    %278 = arith.addf %276, %277 : vector<8x4xf32>
    %279 = vector.extract_strided_slice %275 {offsets = [0, 0], sizes = [1, 4], strides = [1, 1]} : vector<8x4xf32> to vector<1x4xf32>
    %280 = vector.broadcast %279 : vector<1x4xf32> to vector<8x4xf32>
    %281 = arith.mulf %5, %280 : vector<8x4xf32>
    %282 = vector.extract_strided_slice %275 {offsets = [1, 0], sizes = [1, 4], strides = [1, 1]} : vector<8x4xf32> to vector<1x4xf32>
    %283 = vector.broadcast %282 : vector<1x4xf32> to vector<8x4xf32>
    %284 = arith.mulf %8, %283 : vector<8x4xf32>
    %285 = vector.extract_strided_slice %275 {offsets = [2, 0], sizes = [1, 4], strides = [1, 1]} : vector<8x4xf32> to vector<1x4xf32>
    %286 = vector.broadcast %285 : vector<1x4xf32> to vector<8x4xf32>
    %287 = arith.mulf %11, %286 : vector<8x4xf32>
    %288 = vector.extract_strided_slice %275 {offsets = [3, 0], sizes = [1, 4], strides = [1, 1]} : vector<8x4xf32> to vector<1x4xf32>
    %289 = vector.broadcast %288 : vector<1x4xf32> to vector<8x4xf32>
    %290 = arith.mulf %14, %289 : vector<8x4xf32>
    %291 = vector.extract_strided_slice %275 {offsets = [4, 0], sizes = [1, 4], strides = [1, 1]} : vector<8x4xf32> to vector<1x4xf32>
    %292 = vector.broadcast %291 : vector<1x4xf32> to vector<8x4xf32>
    %293 = arith.mulf %17, %292 : vector<8x4xf32>
    %294 = vector.extract_strided_slice %275 {offsets = [5, 0], sizes = [1, 4], strides = [1, 1]} : vector<8x4xf32> to vector<1x4xf32>
    %295 = vector.broadcast %294 : vector<1x4xf32> to vector<8x4xf32>
    %296 = arith.mulf %20, %295 : vector<8x4xf32>
    %297 = vector.extract_strided_slice %275 {offsets = [6, 0], sizes = [1, 4], strides = [1, 1]} : vector<8x4xf32> to vector<1x4xf32>
    %298 = vector.broadcast %297 : vector<1x4xf32> to vector<8x4xf32>
    %299 = arith.mulf %23, %298 : vector<8x4xf32>
    %300 = vector.extract_strided_slice %275 {offsets = [7, 0], sizes = [1, 4], strides = [1, 1]} : vector<8x4xf32> to vector<1x4xf32>
    %301 = vector.broadcast %300 : vector<1x4xf32> to vector<8x4xf32>
    %302 = arith.mulf %26, %301 : vector<8x4xf32>
    %303 = arith.addf %281, %284 : vector<8x4xf32>
    %304 = arith.addf %287, %290 : vector<8x4xf32>
    %305 = arith.addf %293, %296 : vector<8x4xf32>
    %306 = arith.addf %299, %302 : vector<8x4xf32>
    %307 = arith.addf %303, %304 : vector<8x4xf32>
    %308 = arith.addf %305, %306 : vector<8x4xf32>
    %309 = arith.addf %307, %308 : vector<8x4xf32>
    %310 = math.log %309 : vector<8x4xf32>
    %311 = arith.addf %278, %310 : vector<8x4xf32>
    %312 = arith.addf %270, %311 : vector<8x4xf32>
    %c6_58 = arith.constant 6 : index
    %c0_59 = arith.constant 0 : index
    %c0_60 = arith.constant 0 : index
    %313 = vector.load %arg1[%c6_58, %c0_59, %c0_60] : memref<10x8x4xf32, #tpu.memory_space<vmem>>, vector<1x8x4xf32>
    %314 = vector.shape_cast %313 : vector<1x8x4xf32> to vector<8x4xf32>
    %315 = vector.shape_cast %312 : vector<8x4xf32> to vector<1x8x4xf32>
    tpu.vector_store %arg1[%c6_58, %c0_59, %c0_60], %315 {strides = array<i32>} : memref<10x8x4xf32, #tpu.memory_space<vmem>>, vector<1x8x4xf32>,
    %c7_61 = arith.constant 7 : index
    %c0_62 = arith.constant 0 : index
    %c0_63 = arith.constant 0 : index
    %316 = vector.load %arg1[%c7_61, %c0_62, %c0_63] : memref<10x8x4xf32, #tpu.memory_space<vmem>>, vector<1x8x4xf32>
    %317 = vector.shape_cast %316 : vector<1x8x4xf32> to vector<8x4xf32>
    %cst_64 = arith.constant dense<0xFF800000> : vector<4xf32>
    %318 = vector.multi_reduction <maximumf>, %312, %cst_64 [0] : vector<8x4xf32> to vector<4xf32>
    %319 = vector.shape_cast %318 : vector<4xf32> to vector<1x4xf32>
    %320 = vector.broadcast %319 : vector<1x4xf32> to vector<8x4xf32>
    %321 = arith.subf %312, %320 : vector<8x4xf32>
    %322 = math.exp %321 : vector<8x4xf32>
    %323 = vector.broadcast %319 : vector<1x4xf32> to vector<8x4xf32>
    %324 = vector.broadcast %0 : vector<8x1xf32> to vector<8x4xf32>
    %325 = arith.addf %323, %324 : vector<8x4xf32>
    %326 = vector.extract_strided_slice %322 {offsets = [0, 0], sizes = [1, 4], strides = [1, 1]} : vector<8x4xf32> to vector<1x4xf32>
    %327 = vector.broadcast %326 : vector<1x4xf32> to vector<8x4xf32>
    %328 = arith.mulf %5, %327 : vector<8x4xf32>
    %329 = vector.extract_strided_slice %322 {offsets = [1, 0], sizes = [1, 4], strides = [1, 1]} : vector<8x4xf32> to vector<1x4xf32>
    %330 = vector.broadcast %329 : vector<1x4xf32> to vector<8x4xf32>
    %331 = arith.mulf %8, %330 : vector<8x4xf32>
    %332 = vector.extract_strided_slice %322 {offsets = [2, 0], sizes = [1, 4], strides = [1, 1]} : vector<8x4xf32> to vector<1x4xf32>
    %333 = vector.broadcast %332 : vector<1x4xf32> to vector<8x4xf32>
    %334 = arith.mulf %11, %333 : vector<8x4xf32>
    %335 = vector.extract_strided_slice %322 {offsets = [3, 0], sizes = [1, 4], strides = [1, 1]} : vector<8x4xf32> to vector<1x4xf32>
    %336 = vector.broadcast %335 : vector<1x4xf32> to vector<8x4xf32>
    %337 = arith.mulf %14, %336 : vector<8x4xf32>
    %338 = vector.extract_strided_slice %322 {offsets = [4, 0], sizes = [1, 4], strides = [1, 1]} : vector<8x4xf32> to vector<1x4xf32>
    %339 = vector.broadcast %338 : vector<1x4xf32> to vector<8x4xf32>
    %340 = arith.mulf %17, %339 : vector<8x4xf32>
    %341 = vector.extract_strided_slice %322 {offsets = [5, 0], sizes = [1, 4], strides = [1, 1]} : vector<8x4xf32> to vector<1x4xf32>
    %342 = vector.broadcast %341 : vector<1x4xf32> to vector<8x4xf32>
    %343 = arith.mulf %20, %342 : vector<8x4xf32>
    %344 = vector.extract_strided_slice %322 {offsets = [6, 0], sizes = [1, 4], strides = [1, 1]} : vector<8x4xf32> to vector<1x4xf32>
    %345 = vector.broadcast %344 : vector<1x4xf32> to vector<8x4xf32>
    %346 = arith.mulf %23, %345 : vector<8x4xf32>
    %347 = vector.extract_strided_slice %322 {offsets = [7, 0], sizes = [1, 4], strides = [1, 1]} : vector<8x4xf32> to vector<1x4xf32>
    %348 = vector.broadcast %347 : vector<1x4xf32> to vector<8x4xf32>
    %349 = arith.mulf %26, %348 : vector<8x4xf32>
    %350 = arith.addf %328, %331 : vector<8x4xf32>
    %351 = arith.addf %334, %337 : vector<8x4xf32>
    %352 = arith.addf %340, %343 : vector<8x4xf32>
    %353 = arith.addf %346, %349 : vector<8x4xf32>
    %354 = arith.addf %350, %351 : vector<8x4xf32>
    %355 = arith.addf %352, %353 : vector<8x4xf32>
    %356 = arith.addf %354, %355 : vector<8x4xf32>
    %357 = math.log %356 : vector<8x4xf32>
    %358 = arith.addf %325, %357 : vector<8x4xf32>
    %359 = arith.addf %317, %358 : vector<8x4xf32>
    %c7_65 = arith.constant 7 : index
    %c0_66 = arith.constant 0 : index
    %c0_67 = arith.constant 0 : index
    %360 = vector.load %arg1[%c7_65, %c0_66, %c0_67] : memref<10x8x4xf32, #tpu.memory_space<vmem>>, vector<1x8x4xf32>
    %361 = vector.shape_cast %360 : vector<1x8x4xf32> to vector<8x4xf32>
    %362 = vector.shape_cast %359 : vector<8x4xf32> to vector<1x8x4xf32>
    tpu.vector_store %arg1[%c7_65, %c0_66, %c0_67], %362 {strides = array<i32>} : memref<10x8x4xf32, #tpu.memory_space<vmem>>, vector<1x8x4xf32>,
    %c8 = arith.constant 8 : index
    %c0_68 = arith.constant 0 : index
    %c0_69 = arith.constant 0 : index
    %363 = vector.load %arg1[%c8, %c0_68, %c0_69] : memref<10x8x4xf32, #tpu.memory_space<vmem>>, vector<1x8x4xf32>
    %364 = vector.shape_cast %363 : vector<1x8x4xf32> to vector<8x4xf32>
    %cst_70 = arith.constant dense<0xFF800000> : vector<4xf32>
    %365 = vector.multi_reduction <maximumf>, %359, %cst_70 [0] : vector<8x4xf32> to vector<4xf32>
    %366 = vector.shape_cast %365 : vector<4xf32> to vector<1x4xf32>
    %367 = vector.broadcast %366 : vector<1x4xf32> to vector<8x4xf32>
    %368 = arith.subf %359, %367 : vector<8x4xf32>
    %369 = math.exp %368 : vector<8x4xf32>
    %370 = vector.broadcast %366 : vector<1x4xf32> to vector<8x4xf32>
    %371 = vector.broadcast %0 : vector<8x1xf32> to vector<8x4xf32>
    %372 = arith.addf %370, %371 : vector<8x4xf32>
    %373 = vector.extract_strided_slice %369 {offsets = [0, 0], sizes = [1, 4], strides = [1, 1]} : vector<8x4xf32> to vector<1x4xf32>
    %374 = vector.broadcast %373 : vector<1x4xf32> to vector<8x4xf32>
    %375 = arith.mulf %5, %374 : vector<8x4xf32>
    %376 = vector.extract_strided_slice %369 {offsets = [1, 0], sizes = [1, 4], strides = [1, 1]} : vector<8x4xf32> to vector<1x4xf32>
    %377 = vector.broadcast %376 : vector<1x4xf32> to vector<8x4xf32>
    %378 = arith.mulf %8, %377 : vector<8x4xf32>
    %379 = vector.extract_strided_slice %369 {offsets = [2, 0], sizes = [1, 4], strides = [1, 1]} : vector<8x4xf32> to vector<1x4xf32>
    %380 = vector.broadcast %379 : vector<1x4xf32> to vector<8x4xf32>
    %381 = arith.mulf %11, %380 : vector<8x4xf32>
    %382 = vector.extract_strided_slice %369 {offsets = [3, 0], sizes = [1, 4], strides = [1, 1]} : vector<8x4xf32> to vector<1x4xf32>
    %383 = vector.broadcast %382 : vector<1x4xf32> to vector<8x4xf32>
    %384 = arith.mulf %14, %383 : vector<8x4xf32>
    %385 = vector.extract_strided_slice %369 {offsets = [4, 0], sizes = [1, 4], strides = [1, 1]} : vector<8x4xf32> to vector<1x4xf32>
    %386 = vector.broadcast %385 : vector<1x4xf32> to vector<8x4xf32>
    %387 = arith.mulf %17, %386 : vector<8x4xf32>
    %388 = vector.extract_strided_slice %369 {offsets = [5, 0], sizes = [1, 4], strides = [1, 1]} : vector<8x4xf32> to vector<1x4xf32>
    %389 = vector.broadcast %388 : vector<1x4xf32> to vector<8x4xf32>
    %390 = arith.mulf %20, %389 : vector<8x4xf32>
    %391 = vector.extract_strided_slice %369 {offsets = [6, 0], sizes = [1, 4], strides = [1, 1]} : vector<8x4xf32> to vector<1x4xf32>
    %392 = vector.broadcast %391 : vector<1x4xf32> to vector<8x4xf32>
    %393 = arith.mulf %23, %392 : vector<8x4xf32>
    %394 = vector.extract_strided_slice %369 {offsets = [7, 0], sizes = [1, 4], strides = [1, 1]} : vector<8x4xf32> to vector<1x4xf32>
    %395 = vector.broadcast %394 : vector<1x4xf32> to vector<8x4xf32>
    %396 = arith.mulf %26, %395 : vector<8x4xf32>
    %397 = arith.addf %375, %378 : vector<8x4xf32>
    %398 = arith.addf %381, %384 : vector<8x4xf32>
    %399 = arith.addf %387, %390 : vector<8x4xf32>
    %400 = arith.addf %393, %396 : vector<8x4xf32>
    %401 = arith.addf %397, %398 : vector<8x4xf32>
    %402 = arith.addf %399, %400 : vector<8x4xf32>
    %403 = arith.addf %401, %402 : vector<8x4xf32>
    %404 = math.log %403 : vector<8x4xf32>
    %405 = arith.addf %372, %404 : vector<8x4xf32>
    %406 = arith.addf %364, %405 : vector<8x4xf32>
    %c8_71 = arith.constant 8 : index
    %c0_72 = arith.constant 0 : index
    %c0_73 = arith.constant 0 : index
    %407 = vector.load %arg1[%c8_71, %c0_72, %c0_73] : memref<10x8x4xf32, #tpu.memory_space<vmem>>, vector<1x8x4xf32>
    %408 = vector.shape_cast %407 : vector<1x8x4xf32> to vector<8x4xf32>
    %409 = vector.shape_cast %406 : vector<8x4xf32> to vector<1x8x4xf32>
    tpu.vector_store %arg1[%c8_71, %c0_72, %c0_73], %409 {strides = array<i32>} : memref<10x8x4xf32, #tpu.memory_space<vmem>>, vector<1x8x4xf32>,
    %c9 = arith.constant 9 : index
    %c0_74 = arith.constant 0 : index
    %c0_75 = arith.constant 0 : index
    %410 = vector.load %arg1[%c9, %c0_74, %c0_75] : memref<10x8x4xf32, #tpu.memory_space<vmem>>, vector<1x8x4xf32>
    %411 = vector.shape_cast %410 : vector<1x8x4xf32> to vector<8x4xf32>
    %cst_76 = arith.constant dense<0xFF800000> : vector<4xf32>
    %412 = vector.multi_reduction <maximumf>, %406, %cst_76 [0] : vector<8x4xf32> to vector<4xf32>
    %413 = vector.shape_cast %412 : vector<4xf32> to vector<1x4xf32>
    %414 = vector.broadcast %413 : vector<1x4xf32> to vector<8x4xf32>
    %415 = arith.subf %406, %414 : vector<8x4xf32>
    %416 = math.exp %415 : vector<8x4xf32>
    %417 = vector.broadcast %413 : vector<1x4xf32> to vector<8x4xf32>
    %418 = vector.broadcast %0 : vector<8x1xf32> to vector<8x4xf32>
    %419 = arith.addf %417, %418 : vector<8x4xf32>
    %420 = vector.extract_strided_slice %416 {offsets = [0, 0], sizes = [1, 4], strides = [1, 1]} : vector<8x4xf32> to vector<1x4xf32>
    %421 = vector.broadcast %420 : vector<1x4xf32> to vector<8x4xf32>
    %422 = arith.mulf %5, %421 : vector<8x4xf32>
    %423 = vector.extract_strided_slice %416 {offsets = [1, 0], sizes = [1, 4], strides = [1, 1]} : vector<8x4xf32> to vector<1x4xf32>
    %424 = vector.broadcast %423 : vector<1x4xf32> to vector<8x4xf32>
    %425 = arith.mulf %8, %424 : vector<8x4xf32>
    %426 = vector.extract_strided_slice %416 {offsets = [2, 0], sizes = [1, 4], strides = [1, 1]} : vector<8x4xf32> to vector<1x4xf32>
    %427 = vector.broadcast %426 : vector<1x4xf32> to vector<8x4xf32>
    %428 = arith.mulf %11, %427 : vector<8x4xf32>
    %429 = vector.extract_strided_slice %416 {offsets = [3, 0], sizes = [1, 4], strides = [1, 1]} : vector<8x4xf32> to vector<1x4xf32>
    %430 = vector.broadcast %429 : vector<1x4xf32> to vector<8x4xf32>
    %431 = arith.mulf %14, %430 : vector<8x4xf32>
    %432 = vector.extract_strided_slice %416 {offsets = [4, 0], sizes = [1, 4], strides = [1, 1]} : vector<8x4xf32> to vector<1x4xf32>
    %433 = vector.broadcast %432 : vector<1x4xf32> to vector<8x4xf32>
    %434 = arith.mulf %17, %433 : vector<8x4xf32>
    %435 = vector.extract_strided_slice %416 {offsets = [5, 0], sizes = [1, 4], strides = [1, 1]} : vector<8x4xf32> to vector<1x4xf32>
    %436 = vector.broadcast %435 : vector<1x4xf32> to vector<8x4xf32>
    %437 = arith.mulf %20, %436 : vector<8x4xf32>
    %438 = vector.extract_strided_slice %416 {offsets = [6, 0], sizes = [1, 4], strides = [1, 1]} : vector<8x4xf32> to vector<1x4xf32>
    %439 = vector.broadcast %438 : vector<1x4xf32> to vector<8x4xf32>
    %440 = arith.mulf %23, %439 : vector<8x4xf32>
    %441 = vector.extract_strided_slice %416 {offsets = [7, 0], sizes = [1, 4], strides = [1, 1]} : vector<8x4xf32> to vector<1x4xf32>
    %442 = vector.broadcast %441 : vector<1x4xf32> to vector<8x4xf32>
    %443 = arith.mulf %26, %442 : vector<8x4xf32>
    %444 = arith.addf %422, %425 : vector<8x4xf32>
    %445 = arith.addf %428, %431 : vector<8x4xf32>
    %446 = arith.addf %434, %437 : vector<8x4xf32>
    %447 = arith.addf %440, %443 : vector<8x4xf32>
    %448 = arith.addf %444, %445 : vector<8x4xf32>
    %449 = arith.addf %446, %447 : vector<8x4xf32>
    %450 = arith.addf %448, %449 : vector<8x4xf32>
    %451 = math.log %450 : vector<8x4xf32>
    %452 = arith.addf %419, %451 : vector<8x4xf32>
    %453 = arith.addf %411, %452 : vector<8x4xf32>
    %c9_77 = arith.constant 9 : index
    %c0_78 = arith.constant 0 : index
    %c0_79 = arith.constant 0 : index
    %454 = vector.load %arg1[%c9_77, %c0_78, %c0_79] : memref<10x8x4xf32, #tpu.memory_space<vmem>>, vector<1x8x4xf32>
    %455 = vector.shape_cast %454 : vector<1x8x4xf32> to vector<8x4xf32>
    %456 = vector.shape_cast %453 : vector<8x4xf32> to vector<1x8x4xf32>
    tpu.vector_store %arg1[%c9_77, %c0_78, %c0_79], %456 {strides = array<i32>} : memref<10x8x4xf32, #tpu.memory_space<vmem>>, vector<1x8x4xf32>,
    %457 = vector.broadcast %2 : vector<8x1xf32> to vector<8x4xf32>
    %458 = arith.addf %453, %457 : vector<8x4xf32>
    %459 = tpu.iota {dimensions = array<i32: 0>} : vector<8x4xi32>
    %c0_80 = arith.constant 0 : index
    %c0_81 = arith.constant 0 : index
    %460 = vector.load %arg4[%c0_80, %c0_81] : memref<8x8xf32, #tpu.memory_space<vmem>>, vector<8x1xf32>
    %461 = vector.shape_cast %460 : vector<8x1xf32> to vector<8x1xf32>
    %462 = vector.broadcast %461 : vector<8x1xf32> to vector<8x4xf32>
    %c0_82 = arith.constant 0 : index
    %c1_83 = arith.constant 1 : index
    %463 = vector.load %arg4[%c0_82, %c1_83] : memref<8x8xf32, #tpu.memory_space<vmem>>, vector<8x1xf32>
    %464 = vector.shape_cast %463 : vector<8x1xf32> to vector<8x1xf32>
    %465 = vector.broadcast %464 : vector<8x1xf32> to vector<8x4xf32>
    %c0_84 = arith.constant 0 : index
    %c2_85 = arith.constant 2 : index
    %466 = vector.load %arg4[%c0_84, %c2_85] : memref<8x8xf32, #tpu.memory_space<vmem>>, vector<8x1xf32>
    %467 = vector.shape_cast %466 : vector<8x1xf32> to vector<8x1xf32>
    %468 = vector.broadcast %467 : vector<8x1xf32> to vector<8x4xf32>
    %c0_86 = arith.constant 0 : index
    %c3_87 = arith.constant 3 : index
    %469 = vector.load %arg4[%c0_86, %c3_87] : memref<8x8xf32, #tpu.memory_space<vmem>>, vector<8x1xf32>
    %470 = vector.shape_cast %469 : vector<8x1xf32> to vector<8x1xf32>
    %471 = vector.broadcast %470 : vector<8x1xf32> to vector<8x4xf32>
    %c0_88 = arith.constant 0 : index
    %c4_89 = arith.constant 4 : index
    %472 = vector.load %arg4[%c0_88, %c4_89] : memref<8x8xf32, #tpu.memory_space<vmem>>, vector<8x1xf32>
    %473 = vector.shape_cast %472 : vector<8x1xf32> to vector<8x1xf32>
    %474 = vector.broadcast %473 : vector<8x1xf32> to vector<8x4xf32>
    %c0_90 = arith.constant 0 : index
    %c5_91 = arith.constant 5 : index
    %475 = vector.load %arg4[%c0_90, %c5_91] : memref<8x8xf32, #tpu.memory_space<vmem>>, vector<8x1xf32>
    %476 = vector.shape_cast %475 : vector<8x1xf32> to vector<8x1xf32>
    %477 = vector.broadcast %476 : vector<8x1xf32> to vector<8x4xf32>
    %c0_92 = arith.constant 0 : index
    %c6_93 = arith.constant 6 : index
    %478 = vector.load %arg4[%c0_92, %c6_93] : memref<8x8xf32, #tpu.memory_space<vmem>>, vector<8x1xf32>
    %479 = vector.shape_cast %478 : vector<8x1xf32> to vector<8x1xf32>
    %480 = vector.broadcast %479 : vector<8x1xf32> to vector<8x4xf32>
    %c0_94 = arith.constant 0 : index
    %c7_95 = arith.constant 7 : index
    %481 = vector.load %arg4[%c0_94, %c7_95] : memref<8x8xf32, #tpu.memory_space<vmem>>, vector<8x1xf32>
    %482 = vector.shape_cast %481 : vector<8x1xf32> to vector<8x1xf32>
    %483 = vector.broadcast %482 : vector<8x1xf32> to vector<8x4xf32>
    %cst_96 = arith.constant dense<0xFF800000> : vector<4xf32>
    %484 = vector.multi_reduction <maximumf>, %458, %cst_96 [0] : vector<8x4xf32> to vector<4xf32>
    %485 = vector.shape_cast %484 : vector<4xf32> to vector<1x4xf32>
    %486 = vector.broadcast %485 : vector<1x4xf32> to vector<8x4xf32>
    %487 = arith.cmpf oeq, %458, %486 : vector<8x4xf32>
    %c8_i32 = arith.constant 8 : i32
    %488 = vector.broadcast %c8_i32 : i32 to vector<8x4xi32>
    %489 = arith.select %487, %459, %488 : vector<8x4xi1>, vector<8x4xi32>
    %cst_97 = arith.constant dense<2147483647> : vector<4xi32>
    %490 = vector.multi_reduction <minsi>, %489, %cst_97 [0] : vector<8x4xi32> to vector<4xi32>
    %491 = vector.shape_cast %490 : vector<4xi32> to vector<1x4xi32>
    %492 = vector.broadcast %491 : vector<1x4xi32> to vector<8x4xi32>
    %493 = arith.cmpi eq, %459, %492 : vector<8x4xi32>
    %494 = arith.extui %493 : vector<8x4xi1> to vector<8x4xi32>
    %495 = arith.sitofp %494 : vector<8x4xi32> to vector<8x4xf32>
    %c9_98 = arith.constant 9 : index
    %c0_99 = arith.constant 0 : index
    %496 = vector.load %arg7[%c9_98, %c0_99] : memref<10x4xi32, #tpu.memory_space<vmem>>, vector<1x4xi32>
    tpu.vector_store %arg7[%c9_98, %c0_99], %491 {strides = array<i32>} : memref<10x4xi32, #tpu.memory_space<vmem>>, vector<1x4xi32>,
    %c8_100 = arith.constant 8 : index
    %c0_101 = arith.constant 0 : index
    %c0_102 = arith.constant 0 : index
    %497 = vector.load %arg1[%c8_100, %c0_101, %c0_102] : memref<10x8x4xf32, #tpu.memory_space<vmem>>, vector<1x8x4xf32>
    %498 = vector.shape_cast %497 : vector<1x8x4xf32> to vector<8x4xf32>
    %499 = vector.extract_strided_slice %495 {offsets = [0, 0], sizes = [1, 4], strides = [1, 1]} : vector<8x4xf32> to vector<1x4xf32>
    %500 = vector.broadcast %499 : vector<1x4xf32> to vector<8x4xf32>
    %501 = arith.mulf %462, %500 : vector<8x4xf32>
    %502 = vector.extract_strided_slice %495 {offsets = [1, 0], sizes = [1, 4], strides = [1, 1]} : vector<8x4xf32> to vector<1x4xf32>
    %503 = vector.broadcast %502 : vector<1x4xf32> to vector<8x4xf32>
    %504 = arith.mulf %465, %503 : vector<8x4xf32>
    %505 = vector.extract_strided_slice %495 {offsets = [2, 0], sizes = [1, 4], strides = [1, 1]} : vector<8x4xf32> to vector<1x4xf32>
    %506 = vector.broadcast %505 : vector<1x4xf32> to vector<8x4xf32>
    %507 = arith.mulf %468, %506 : vector<8x4xf32>
    %508 = vector.extract_strided_slice %495 {offsets = [3, 0], sizes = [1, 4], strides = [1, 1]} : vector<8x4xf32> to vector<1x4xf32>
    %509 = vector.broadcast %508 : vector<1x4xf32> to vector<8x4xf32>
    %510 = arith.mulf %471, %509 : vector<8x4xf32>
    %511 = vector.extract_strided_slice %495 {offsets = [4, 0], sizes = [1, 4], strides = [1, 1]} : vector<8x4xf32> to vector<1x4xf32>
    %512 = vector.broadcast %511 : vector<1x4xf32> to vector<8x4xf32>
    %513 = arith.mulf %474, %512 : vector<8x4xf32>
    %514 = vector.extract_strided_slice %495 {offsets = [5, 0], sizes = [1, 4], strides = [1, 1]} : vector<8x4xf32> to vector<1x4xf32>
    %515 = vector.broadcast %514 : vector<1x4xf32> to vector<8x4xf32>
    %516 = arith.mulf %477, %515 : vector<8x4xf32>
    %517 = vector.extract_strided_slice %495 {offsets = [6, 0], sizes = [1, 4], strides = [1, 1]} : vector<8x4xf32> to vector<1x4xf32>
    %518 = vector.broadcast %517 : vector<1x4xf32> to vector<8x4xf32>
    %519 = arith.mulf %480, %518 : vector<8x4xf32>
    %520 = vector.extract_strided_slice %495 {offsets = [7, 0], sizes = [1, 4], strides = [1, 1]} : vector<8x4xf32> to vector<1x4xf32>
    %521 = vector.broadcast %520 : vector<1x4xf32> to vector<8x4xf32>
    %522 = arith.mulf %483, %521 : vector<8x4xf32>
    %523 = arith.addf %501, %504 : vector<8x4xf32>
    %524 = arith.addf %507, %510 : vector<8x4xf32>
    %525 = arith.addf %513, %516 : vector<8x4xf32>
    %526 = arith.addf %519, %522 : vector<8x4xf32>
    %527 = arith.addf %523, %524 : vector<8x4xf32>
    %528 = arith.addf %525, %526 : vector<8x4xf32>
    %529 = arith.addf %527, %528 : vector<8x4xf32>
    %530 = arith.addf %498, %529 : vector<8x4xf32>
    %cst_103 = arith.constant dense<0xFF800000> : vector<4xf32>
    %531 = vector.multi_reduction <maximumf>, %530, %cst_103 [0] : vector<8x4xf32> to vector<4xf32>
    %532 = vector.shape_cast %531 : vector<4xf32> to vector<1x4xf32>
    %533 = vector.broadcast %532 : vector<1x4xf32> to vector<8x4xf32>
    %534 = arith.cmpf oeq, %530, %533 : vector<8x4xf32>
    %c8_i32_104 = arith.constant 8 : i32
    %535 = vector.broadcast %c8_i32_104 : i32 to vector<8x4xi32>
    %536 = arith.select %534, %459, %535 : vector<8x4xi1>, vector<8x4xi32>
    %cst_105 = arith.constant dense<2147483647> : vector<4xi32>
    %537 = vector.multi_reduction <minsi>, %536, %cst_105 [0] : vector<8x4xi32> to vector<4xi32>
    %538 = vector.shape_cast %537 : vector<4xi32> to vector<1x4xi32>
    %539 = vector.broadcast %538 : vector<1x4xi32> to vector<8x4xi32>
    %540 = arith.cmpi eq, %459, %539 : vector<8x4xi32>
    %541 = arith.extui %540 : vector<8x4xi1> to vector<8x4xi32>
    %542 = arith.sitofp %541 : vector<8x4xi32> to vector<8x4xf32>
    %c8_106 = arith.constant 8 : index
    %c0_107 = arith.constant 0 : index
    %543 = vector.load %arg7[%c8_106, %c0_107] : memref<10x4xi32, #tpu.memory_space<vmem>>, vector<1x4xi32>
    tpu.vector_store %arg7[%c8_106, %c0_107], %538 {strides = array<i32>} : memref<10x4xi32, #tpu.memory_space<vmem>>, vector<1x4xi32>,
    %c7_108 = arith.constant 7 : index
    %c0_109 = arith.constant 0 : index
    %c0_110 = arith.constant 0 : index
    %544 = vector.load %arg1[%c7_108, %c0_109, %c0_110] : memref<10x8x4xf32, #tpu.memory_space<vmem>>, vector<1x8x4xf32>
    %545 = vector.shape_cast %544 : vector<1x8x4xf32> to vector<8x4xf32>
    %546 = vector.extract_strided_slice %542 {offsets = [0, 0], sizes = [1, 4], strides = [1, 1]} : vector<8x4xf32> to vector<1x4xf32>
    %547 = vector.broadcast %546 : vector<1x4xf32> to vector<8x4xf32>
    %548 = arith.mulf %462, %547 : vector<8x4xf32>
    %549 = vector.extract_strided_slice %542 {offsets = [1, 0], sizes = [1, 4], strides = [1, 1]} : vector<8x4xf32> to vector<1x4xf32>
    %550 = vector.broadcast %549 : vector<1x4xf32> to vector<8x4xf32>
    %551 = arith.mulf %465, %550 : vector<8x4xf32>
    %552 = vector.extract_strided_slice %542 {offsets = [2, 0], sizes = [1, 4], strides = [1, 1]} : vector<8x4xf32> to vector<1x4xf32>
    %553 = vector.broadcast %552 : vector<1x4xf32> to vector<8x4xf32>
    %554 = arith.mulf %468, %553 : vector<8x4xf32>
    %555 = vector.extract_strided_slice %542 {offsets = [3, 0], sizes = [1, 4], strides = [1, 1]} : vector<8x4xf32> to vector<1x4xf32>
    %556 = vector.broadcast %555 : vector<1x4xf32> to vector<8x4xf32>
    %557 = arith.mulf %471, %556 : vector<8x4xf32>
    %558 = vector.extract_strided_slice %542 {offsets = [4, 0], sizes = [1, 4], strides = [1, 1]} : vector<8x4xf32> to vector<1x4xf32>
    %559 = vector.broadcast %558 : vector<1x4xf32> to vector<8x4xf32>
    %560 = arith.mulf %474, %559 : vector<8x4xf32>
    %561 = vector.extract_strided_slice %542 {offsets = [5, 0], sizes = [1, 4], strides = [1, 1]} : vector<8x4xf32> to vector<1x4xf32>
    %562 = vector.broadcast %561 : vector<1x4xf32> to vector<8x4xf32>
    %563 = arith.mulf %477, %562 : vector<8x4xf32>
    %564 = vector.extract_strided_slice %542 {offsets = [6, 0], sizes = [1, 4], strides = [1, 1]} : vector<8x4xf32> to vector<1x4xf32>
    %565 = vector.broadcast %564 : vector<1x4xf32> to vector<8x4xf32>
    %566 = arith.mulf %480, %565 : vector<8x4xf32>
    %567 = vector.extract_strided_slice %542 {offsets = [7, 0], sizes = [1, 4], strides = [1, 1]} : vector<8x4xf32> to vector<1x4xf32>
    %568 = vector.broadcast %567 : vector<1x4xf32> to vector<8x4xf32>
    %569 = arith.mulf %483, %568 : vector<8x4xf32>
    %570 = arith.addf %548, %551 : vector<8x4xf32>
    %571 = arith.addf %554, %557 : vector<8x4xf32>
    %572 = arith.addf %560, %563 : vector<8x4xf32>
    %573 = arith.addf %566, %569 : vector<8x4xf32>
    %574 = arith.addf %570, %571 : vector<8x4xf32>
    %575 = arith.addf %572, %573 : vector<8x4xf32>
    %576 = arith.addf %574, %575 : vector<8x4xf32>
    %577 = arith.addf %545, %576 : vector<8x4xf32>
    %cst_111 = arith.constant dense<0xFF800000> : vector<4xf32>
    %578 = vector.multi_reduction <maximumf>, %577, %cst_111 [0] : vector<8x4xf32> to vector<4xf32>
    %579 = vector.shape_cast %578 : vector<4xf32> to vector<1x4xf32>
    %580 = vector.broadcast %579 : vector<1x4xf32> to vector<8x4xf32>
    %581 = arith.cmpf oeq, %577, %580 : vector<8x4xf32>
    %c8_i32_112 = arith.constant 8 : i32
    %582 = vector.broadcast %c8_i32_112 : i32 to vector<8x4xi32>
    %583 = arith.select %581, %459, %582 : vector<8x4xi1>, vector<8x4xi32>
    %cst_113 = arith.constant dense<2147483647> : vector<4xi32>
    %584 = vector.multi_reduction <minsi>, %583, %cst_113 [0] : vector<8x4xi32> to vector<4xi32>
    %585 = vector.shape_cast %584 : vector<4xi32> to vector<1x4xi32>
    %586 = vector.broadcast %585 : vector<1x4xi32> to vector<8x4xi32>
    %587 = arith.cmpi eq, %459, %586 : vector<8x4xi32>
    %588 = arith.extui %587 : vector<8x4xi1> to vector<8x4xi32>
    %589 = arith.sitofp %588 : vector<8x4xi32> to vector<8x4xf32>
    %c7_114 = arith.constant 7 : index
    %c0_115 = arith.constant 0 : index
    %590 = vector.load %arg7[%c7_114, %c0_115] : memref<10x4xi32, #tpu.memory_space<vmem>>, vector<1x4xi32>
    tpu.vector_store %arg7[%c7_114, %c0_115], %585 {strides = array<i32>} : memref<10x4xi32, #tpu.memory_space<vmem>>, vector<1x4xi32>,
    %c6_116 = arith.constant 6 : index
    %c0_117 = arith.constant 0 : index
    %c0_118 = arith.constant 0 : index
    %591 = vector.load %arg1[%c6_116, %c0_117, %c0_118] : memref<10x8x4xf32, #tpu.memory_space<vmem>>, vector<1x8x4xf32>
    %592 = vector.shape_cast %591 : vector<1x8x4xf32> to vector<8x4xf32>
    %593 = vector.extract_strided_slice %589 {offsets = [0, 0], sizes = [1, 4], strides = [1, 1]} : vector<8x4xf32> to vector<1x4xf32>
    %594 = vector.broadcast %593 : vector<1x4xf32> to vector<8x4xf32>
    %595 = arith.mulf %462, %594 : vector<8x4xf32>
    %596 = vector.extract_strided_slice %589 {offsets = [1, 0], sizes = [1, 4], strides = [1, 1]} : vector<8x4xf32> to vector<1x4xf32>
    %597 = vector.broadcast %596 : vector<1x4xf32> to vector<8x4xf32>
    %598 = arith.mulf %465, %597 : vector<8x4xf32>
    %599 = vector.extract_strided_slice %589 {offsets = [2, 0], sizes = [1, 4], strides = [1, 1]} : vector<8x4xf32> to vector<1x4xf32>
    %600 = vector.broadcast %599 : vector<1x4xf32> to vector<8x4xf32>
    %601 = arith.mulf %468, %600 : vector<8x4xf32>
    %602 = vector.extract_strided_slice %589 {offsets = [3, 0], sizes = [1, 4], strides = [1, 1]} : vector<8x4xf32> to vector<1x4xf32>
    %603 = vector.broadcast %602 : vector<1x4xf32> to vector<8x4xf32>
    %604 = arith.mulf %471, %603 : vector<8x4xf32>
    %605 = vector.extract_strided_slice %589 {offsets = [4, 0], sizes = [1, 4], strides = [1, 1]} : vector<8x4xf32> to vector<1x4xf32>
    %606 = vector.broadcast %605 : vector<1x4xf32> to vector<8x4xf32>
    %607 = arith.mulf %474, %606 : vector<8x4xf32>
    %608 = vector.extract_strided_slice %589 {offsets = [5, 0], sizes = [1, 4], strides = [1, 1]} : vector<8x4xf32> to vector<1x4xf32>
    %609 = vector.broadcast %608 : vector<1x4xf32> to vector<8x4xf32>
    %610 = arith.mulf %477, %609 : vector<8x4xf32>
    %611 = vector.extract_strided_slice %589 {offsets = [6, 0], sizes = [1, 4], strides = [1, 1]} : vector<8x4xf32> to vector<1x4xf32>
    %612 = vector.broadcast %611 : vector<1x4xf32> to vector<8x4xf32>
    %613 = arith.mulf %480, %612 : vector<8x4xf32>
    %614 = vector.extract_strided_slice %589 {offsets = [7, 0], sizes = [1, 4], strides = [1, 1]} : vector<8x4xf32> to vector<1x4xf32>
    %615 = vector.broadcast %614 : vector<1x4xf32> to vector<8x4xf32>
    %616 = arith.mulf %483, %615 : vector<8x4xf32>
    %617 = arith.addf %595, %598 : vector<8x4xf32>
    %618 = arith.addf %601, %604 : vector<8x4xf32>
    %619 = arith.addf %607, %610 : vector<8x4xf32>
    %620 = arith.addf %613, %616 : vector<8x4xf32>
    %621 = arith.addf %617, %618 : vector<8x4xf32>
    %622 = arith.addf %619, %620 : vector<8x4xf32>
    %623 = arith.addf %621, %622 : vector<8x4xf32>
    %624 = arith.addf %592, %623 : vector<8x4xf32>
    %cst_119 = arith.constant dense<0xFF800000> : vector<4xf32>
    %625 = vector.multi_reduction <maximumf>, %624, %cst_119 [0] : vector<8x4xf32> to vector<4xf32>
    %626 = vector.shape_cast %625 : vector<4xf32> to vector<1x4xf32>
    %627 = vector.broadcast %626 : vector<1x4xf32> to vector<8x4xf32>
    %628 = arith.cmpf oeq, %624, %627 : vector<8x4xf32>
    %c8_i32_120 = arith.constant 8 : i32
    %629 = vector.broadcast %c8_i32_120 : i32 to vector<8x4xi32>
    %630 = arith.select %628, %459, %629 : vector<8x4xi1>, vector<8x4xi32>
    %cst_121 = arith.constant dense<2147483647> : vector<4xi32>
    %631 = vector.multi_reduction <minsi>, %630, %cst_121 [0] : vector<8x4xi32> to vector<4xi32>
    %632 = vector.shape_cast %631 : vector<4xi32> to vector<1x4xi32>
    %633 = vector.broadcast %632 : vector<1x4xi32> to vector<8x4xi32>
    %634 = arith.cmpi eq, %459, %633 : vector<8x4xi32>
    %635 = arith.extui %634 : vector<8x4xi1> to vector<8x4xi32>
    %636 = arith.sitofp %635 : vector<8x4xi32> to vector<8x4xf32>
    %c6_122 = arith.constant 6 : index
    %c0_123 = arith.constant 0 : index
    %637 = vector.load %arg7[%c6_122, %c0_123] : memref<10x4xi32, #tpu.memory_space<vmem>>, vector<1x4xi32>
    tpu.vector_store %arg7[%c6_122, %c0_123], %632 {strides = array<i32>} : memref<10x4xi32, #tpu.memory_space<vmem>>, vector<1x4xi32>,
    %c5_124 = arith.constant 5 : index
    %c0_125 = arith.constant 0 : index
    %c0_126 = arith.constant 0 : index
    %638 = vector.load %arg1[%c5_124, %c0_125, %c0_126] : memref<10x8x4xf32, #tpu.memory_space<vmem>>, vector<1x8x4xf32>
    %639 = vector.shape_cast %638 : vector<1x8x4xf32> to vector<8x4xf32>
    %640 = vector.extract_strided_slice %636 {offsets = [0, 0], sizes = [1, 4], strides = [1, 1]} : vector<8x4xf32> to vector<1x4xf32>
    %641 = vector.broadcast %640 : vector<1x4xf32> to vector<8x4xf32>
    %642 = arith.mulf %462, %641 : vector<8x4xf32>
    %643 = vector.extract_strided_slice %636 {offsets = [1, 0], sizes = [1, 4], strides = [1, 1]} : vector<8x4xf32> to vector<1x4xf32>
    %644 = vector.broadcast %643 : vector<1x4xf32> to vector<8x4xf32>
    %645 = arith.mulf %465, %644 : vector<8x4xf32>
    %646 = vector.extract_strided_slice %636 {offsets = [2, 0], sizes = [1, 4], strides = [1, 1]} : vector<8x4xf32> to vector<1x4xf32>
    %647 = vector.broadcast %646 : vector<1x4xf32> to vector<8x4xf32>
    %648 = arith.mulf %468, %647 : vector<8x4xf32>
    %649 = vector.extract_strided_slice %636 {offsets = [3, 0], sizes = [1, 4], strides = [1, 1]} : vector<8x4xf32> to vector<1x4xf32>
    %650 = vector.broadcast %649 : vector<1x4xf32> to vector<8x4xf32>
    %651 = arith.mulf %471, %650 : vector<8x4xf32>
    %652 = vector.extract_strided_slice %636 {offsets = [4, 0], sizes = [1, 4], strides = [1, 1]} : vector<8x4xf32> to vector<1x4xf32>
    %653 = vector.broadcast %652 : vector<1x4xf32> to vector<8x4xf32>
    %654 = arith.mulf %474, %653 : vector<8x4xf32>
    %655 = vector.extract_strided_slice %636 {offsets = [5, 0], sizes = [1, 4], strides = [1, 1]} : vector<8x4xf32> to vector<1x4xf32>
    %656 = vector.broadcast %655 : vector<1x4xf32> to vector<8x4xf32>
    %657 = arith.mulf %477, %656 : vector<8x4xf32>
    %658 = vector.extract_strided_slice %636 {offsets = [6, 0], sizes = [1, 4], strides = [1, 1]} : vector<8x4xf32> to vector<1x4xf32>
    %659 = vector.broadcast %658 : vector<1x4xf32> to vector<8x4xf32>
    %660 = arith.mulf %480, %659 : vector<8x4xf32>
    %661 = vector.extract_strided_slice %636 {offsets = [7, 0], sizes = [1, 4], strides = [1, 1]} : vector<8x4xf32> to vector<1x4xf32>
    %662 = vector.broadcast %661 : vector<1x4xf32> to vector<8x4xf32>
    %663 = arith.mulf %483, %662 : vector<8x4xf32>
    %664 = arith.addf %642, %645 : vector<8x4xf32>
    %665 = arith.addf %648, %651 : vector<8x4xf32>
    %666 = arith.addf %654, %657 : vector<8x4xf32>
    %667 = arith.addf %660, %663 : vector<8x4xf32>
    %668 = arith.addf %664, %665 : vector<8x4xf32>
    %669 = arith.addf %666, %667 : vector<8x4xf32>
    %670 = arith.addf %668, %669 : vector<8x4xf32>
    %671 = arith.addf %639, %670 : vector<8x4xf32>
    %cst_127 = arith.constant dense<0xFF800000> : vector<4xf32>
    %672 = vector.multi_reduction <maximumf>, %671, %cst_127 [0] : vector<8x4xf32> to vector<4xf32>
    %673 = vector.shape_cast %672 : vector<4xf32> to vector<1x4xf32>
    %674 = vector.broadcast %673 : vector<1x4xf32> to vector<8x4xf32>
    %675 = arith.cmpf oeq, %671, %674 : vector<8x4xf32>
    %c8_i32_128 = arith.constant 8 : i32
    %676 = vector.broadcast %c8_i32_128 : i32 to vector<8x4xi32>
    %677 = arith.select %675, %459, %676 : vector<8x4xi1>, vector<8x4xi32>
    %cst_129 = arith.constant dense<2147483647> : vector<4xi32>
    %678 = vector.multi_reduction <minsi>, %677, %cst_129 [0] : vector<8x4xi32> to vector<4xi32>
    %679 = vector.shape_cast %678 : vector<4xi32> to vector<1x4xi32>
    %680 = vector.broadcast %679 : vector<1x4xi32> to vector<8x4xi32>
    %681 = arith.cmpi eq, %459, %680 : vector<8x4xi32>
    %682 = arith.extui %681 : vector<8x4xi1> to vector<8x4xi32>
    %683 = arith.sitofp %682 : vector<8x4xi32> to vector<8x4xf32>
    %c5_130 = arith.constant 5 : index
    %c0_131 = arith.constant 0 : index
    %684 = vector.load %arg7[%c5_130, %c0_131] : memref<10x4xi32, #tpu.memory_space<vmem>>, vector<1x4xi32>
    tpu.vector_store %arg7[%c5_130, %c0_131], %679 {strides = array<i32>} : memref<10x4xi32, #tpu.memory_space<vmem>>, vector<1x4xi32>,
    %c4_132 = arith.constant 4 : index
    %c0_133 = arith.constant 0 : index
    %c0_134 = arith.constant 0 : index
    %685 = vector.load %arg1[%c4_132, %c0_133, %c0_134] : memref<10x8x4xf32, #tpu.memory_space<vmem>>, vector<1x8x4xf32>
    %686 = vector.shape_cast %685 : vector<1x8x4xf32> to vector<8x4xf32>
    %687 = vector.extract_strided_slice %683 {offsets = [0, 0], sizes = [1, 4], strides = [1, 1]} : vector<8x4xf32> to vector<1x4xf32>
    %688 = vector.broadcast %687 : vector<1x4xf32> to vector<8x4xf32>
    %689 = arith.mulf %462, %688 : vector<8x4xf32>
    %690 = vector.extract_strided_slice %683 {offsets = [1, 0], sizes = [1, 4], strides = [1, 1]} : vector<8x4xf32> to vector<1x4xf32>
    %691 = vector.broadcast %690 : vector<1x4xf32> to vector<8x4xf32>
    %692 = arith.mulf %465, %691 : vector<8x4xf32>
    %693 = vector.extract_strided_slice %683 {offsets = [2, 0], sizes = [1, 4], strides = [1, 1]} : vector<8x4xf32> to vector<1x4xf32>
    %694 = vector.broadcast %693 : vector<1x4xf32> to vector<8x4xf32>
    %695 = arith.mulf %468, %694 : vector<8x4xf32>
    %696 = vector.extract_strided_slice %683 {offsets = [3, 0], sizes = [1, 4], strides = [1, 1]} : vector<8x4xf32> to vector<1x4xf32>
    %697 = vector.broadcast %696 : vector<1x4xf32> to vector<8x4xf32>
    %698 = arith.mulf %471, %697 : vector<8x4xf32>
    %699 = vector.extract_strided_slice %683 {offsets = [4, 0], sizes = [1, 4], strides = [1, 1]} : vector<8x4xf32> to vector<1x4xf32>
    %700 = vector.broadcast %699 : vector<1x4xf32> to vector<8x4xf32>
    %701 = arith.mulf %474, %700 : vector<8x4xf32>
    %702 = vector.extract_strided_slice %683 {offsets = [5, 0], sizes = [1, 4], strides = [1, 1]} : vector<8x4xf32> to vector<1x4xf32>
    %703 = vector.broadcast %702 : vector<1x4xf32> to vector<8x4xf32>
    %704 = arith.mulf %477, %703 : vector<8x4xf32>
    %705 = vector.extract_strided_slice %683 {offsets = [6, 0], sizes = [1, 4], strides = [1, 1]} : vector<8x4xf32> to vector<1x4xf32>
    %706 = vector.broadcast %705 : vector<1x4xf32> to vector<8x4xf32>
    %707 = arith.mulf %480, %706 : vector<8x4xf32>
    %708 = vector.extract_strided_slice %683 {offsets = [7, 0], sizes = [1, 4], strides = [1, 1]} : vector<8x4xf32> to vector<1x4xf32>
    %709 = vector.broadcast %708 : vector<1x4xf32> to vector<8x4xf32>
    %710 = arith.mulf %483, %709 : vector<8x4xf32>
    %711 = arith.addf %689, %692 : vector<8x4xf32>
    %712 = arith.addf %695, %698 : vector<8x4xf32>
    %713 = arith.addf %701, %704 : vector<8x4xf32>
    %714 = arith.addf %707, %710 : vector<8x4xf32>
    %715 = arith.addf %711, %712 : vector<8x4xf32>
    %716 = arith.addf %713, %714 : vector<8x4xf32>
    %717 = arith.addf %715, %716 : vector<8x4xf32>
    %718 = arith.addf %686, %717 : vector<8x4xf32>
    %cst_135 = arith.constant dense<0xFF800000> : vector<4xf32>
    %719 = vector.multi_reduction <maximumf>, %718, %cst_135 [0] : vector<8x4xf32> to vector<4xf32>
    %720 = vector.shape_cast %719 : vector<4xf32> to vector<1x4xf32>
    %721 = vector.broadcast %720 : vector<1x4xf32> to vector<8x4xf32>
    %722 = arith.cmpf oeq, %718, %721 : vector<8x4xf32>
    %c8_i32_136 = arith.constant 8 : i32
    %723 = vector.broadcast %c8_i32_136 : i32 to vector<8x4xi32>
    %724 = arith.select %722, %459, %723 : vector<8x4xi1>, vector<8x4xi32>
    %cst_137 = arith.constant dense<2147483647> : vector<4xi32>
    %725 = vector.multi_reduction <minsi>, %724, %cst_137 [0] : vector<8x4xi32> to vector<4xi32>
    %726 = vector.shape_cast %725 : vector<4xi32> to vector<1x4xi32>
    %727 = vector.broadcast %726 : vector<1x4xi32> to vector<8x4xi32>
    %728 = arith.cmpi eq, %459, %727 : vector<8x4xi32>
    %729 = arith.extui %728 : vector<8x4xi1> to vector<8x4xi32>
    %730 = arith.sitofp %729 : vector<8x4xi32> to vector<8x4xf32>
    %c4_138 = arith.constant 4 : index
    %c0_139 = arith.constant 0 : index
    %731 = vector.load %arg7[%c4_138, %c0_139] : memref<10x4xi32, #tpu.memory_space<vmem>>, vector<1x4xi32>
    tpu.vector_store %arg7[%c4_138, %c0_139], %726 {strides = array<i32>} : memref<10x4xi32, #tpu.memory_space<vmem>>, vector<1x4xi32>,
    %c3_140 = arith.constant 3 : index
    %c0_141 = arith.constant 0 : index
    %c0_142 = arith.constant 0 : index
    %732 = vector.load %arg1[%c3_140, %c0_141, %c0_142] : memref<10x8x4xf32, #tpu.memory_space<vmem>>, vector<1x8x4xf32>
    %733 = vector.shape_cast %732 : vector<1x8x4xf32> to vector<8x4xf32>
    %734 = vector.extract_strided_slice %730 {offsets = [0, 0], sizes = [1, 4], strides = [1, 1]} : vector<8x4xf32> to vector<1x4xf32>
    %735 = vector.broadcast %734 : vector<1x4xf32> to vector<8x4xf32>
    %736 = arith.mulf %462, %735 : vector<8x4xf32>
    %737 = vector.extract_strided_slice %730 {offsets = [1, 0], sizes = [1, 4], strides = [1, 1]} : vector<8x4xf32> to vector<1x4xf32>
    %738 = vector.broadcast %737 : vector<1x4xf32> to vector<8x4xf32>
    %739 = arith.mulf %465, %738 : vector<8x4xf32>
    %740 = vector.extract_strided_slice %730 {offsets = [2, 0], sizes = [1, 4], strides = [1, 1]} : vector<8x4xf32> to vector<1x4xf32>
    %741 = vector.broadcast %740 : vector<1x4xf32> to vector<8x4xf32>
    %742 = arith.mulf %468, %741 : vector<8x4xf32>
    %743 = vector.extract_strided_slice %730 {offsets = [3, 0], sizes = [1, 4], strides = [1, 1]} : vector<8x4xf32> to vector<1x4xf32>
    %744 = vector.broadcast %743 : vector<1x4xf32> to vector<8x4xf32>
    %745 = arith.mulf %471, %744 : vector<8x4xf32>
    %746 = vector.extract_strided_slice %730 {offsets = [4, 0], sizes = [1, 4], strides = [1, 1]} : vector<8x4xf32> to vector<1x4xf32>
    %747 = vector.broadcast %746 : vector<1x4xf32> to vector<8x4xf32>
    %748 = arith.mulf %474, %747 : vector<8x4xf32>
    %749 = vector.extract_strided_slice %730 {offsets = [5, 0], sizes = [1, 4], strides = [1, 1]} : vector<8x4xf32> to vector<1x4xf32>
    %750 = vector.broadcast %749 : vector<1x4xf32> to vector<8x4xf32>
    %751 = arith.mulf %477, %750 : vector<8x4xf32>
    %752 = vector.extract_strided_slice %730 {offsets = [6, 0], sizes = [1, 4], strides = [1, 1]} : vector<8x4xf32> to vector<1x4xf32>
    %753 = vector.broadcast %752 : vector<1x4xf32> to vector<8x4xf32>
    %754 = arith.mulf %480, %753 : vector<8x4xf32>
    %755 = vector.extract_strided_slice %730 {offsets = [7, 0], sizes = [1, 4], strides = [1, 1]} : vector<8x4xf32> to vector<1x4xf32>
    %756 = vector.broadcast %755 : vector<1x4xf32> to vector<8x4xf32>
    %757 = arith.mulf %483, %756 : vector<8x4xf32>
    %758 = arith.addf %736, %739 : vector<8x4xf32>
    %759 = arith.addf %742, %745 : vector<8x4xf32>
    %760 = arith.addf %748, %751 : vector<8x4xf32>
    %761 = arith.addf %754, %757 : vector<8x4xf32>
    %762 = arith.addf %758, %759 : vector<8x4xf32>
    %763 = arith.addf %760, %761 : vector<8x4xf32>
    %764 = arith.addf %762, %763 : vector<8x4xf32>
    %765 = arith.addf %733, %764 : vector<8x4xf32>
    %cst_143 = arith.constant dense<0xFF800000> : vector<4xf32>
    %766 = vector.multi_reduction <maximumf>, %765, %cst_143 [0] : vector<8x4xf32> to vector<4xf32>
    %767 = vector.shape_cast %766 : vector<4xf32> to vector<1x4xf32>
    %768 = vector.broadcast %767 : vector<1x4xf32> to vector<8x4xf32>
    %769 = arith.cmpf oeq, %765, %768 : vector<8x4xf32>
    %c8_i32_144 = arith.constant 8 : i32
    %770 = vector.broadcast %c8_i32_144 : i32 to vector<8x4xi32>
    %771 = arith.select %769, %459, %770 : vector<8x4xi1>, vector<8x4xi32>
    %cst_145 = arith.constant dense<2147483647> : vector<4xi32>
    %772 = vector.multi_reduction <minsi>, %771, %cst_145 [0] : vector<8x4xi32> to vector<4xi32>
    %773 = vector.shape_cast %772 : vector<4xi32> to vector<1x4xi32>
    %774 = vector.broadcast %773 : vector<1x4xi32> to vector<8x4xi32>
    %775 = arith.cmpi eq, %459, %774 : vector<8x4xi32>
    %776 = arith.extui %775 : vector<8x4xi1> to vector<8x4xi32>
    %777 = arith.sitofp %776 : vector<8x4xi32> to vector<8x4xf32>
    %c3_146 = arith.constant 3 : index
    %c0_147 = arith.constant 0 : index
    %778 = vector.load %arg7[%c3_146, %c0_147] : memref<10x4xi32, #tpu.memory_space<vmem>>, vector<1x4xi32>
    tpu.vector_store %arg7[%c3_146, %c0_147], %773 {strides = array<i32>} : memref<10x4xi32, #tpu.memory_space<vmem>>, vector<1x4xi32>,
    %c2_148 = arith.constant 2 : index
    %c0_149 = arith.constant 0 : index
    %c0_150 = arith.constant 0 : index
    %779 = vector.load %arg1[%c2_148, %c0_149, %c0_150] : memref<10x8x4xf32, #tpu.memory_space<vmem>>, vector<1x8x4xf32>
    %780 = vector.shape_cast %779 : vector<1x8x4xf32> to vector<8x4xf32>
    %781 = vector.extract_strided_slice %777 {offsets = [0, 0], sizes = [1, 4], strides = [1, 1]} : vector<8x4xf32> to vector<1x4xf32>
    %782 = vector.broadcast %781 : vector<1x4xf32> to vector<8x4xf32>
    %783 = arith.mulf %462, %782 : vector<8x4xf32>
    %784 = vector.extract_strided_slice %777 {offsets = [1, 0], sizes = [1, 4], strides = [1, 1]} : vector<8x4xf32> to vector<1x4xf32>
    %785 = vector.broadcast %784 : vector<1x4xf32> to vector<8x4xf32>
    %786 = arith.mulf %465, %785 : vector<8x4xf32>
    %787 = vector.extract_strided_slice %777 {offsets = [2, 0], sizes = [1, 4], strides = [1, 1]} : vector<8x4xf32> to vector<1x4xf32>
    %788 = vector.broadcast %787 : vector<1x4xf32> to vector<8x4xf32>
    %789 = arith.mulf %468, %788 : vector<8x4xf32>
    %790 = vector.extract_strided_slice %777 {offsets = [3, 0], sizes = [1, 4], strides = [1, 1]} : vector<8x4xf32> to vector<1x4xf32>
    %791 = vector.broadcast %790 : vector<1x4xf32> to vector<8x4xf32>
    %792 = arith.mulf %471, %791 : vector<8x4xf32>
    %793 = vector.extract_strided_slice %777 {offsets = [4, 0], sizes = [1, 4], strides = [1, 1]} : vector<8x4xf32> to vector<1x4xf32>
    %794 = vector.broadcast %793 : vector<1x4xf32> to vector<8x4xf32>
    %795 = arith.mulf %474, %794 : vector<8x4xf32>
    %796 = vector.extract_strided_slice %777 {offsets = [5, 0], sizes = [1, 4], strides = [1, 1]} : vector<8x4xf32> to vector<1x4xf32>
    %797 = vector.broadcast %796 : vector<1x4xf32> to vector<8x4xf32>
    %798 = arith.mulf %477, %797 : vector<8x4xf32>
    %799 = vector.extract_strided_slice %777 {offsets = [6, 0], sizes = [1, 4], strides = [1, 1]} : vector<8x4xf32> to vector<1x4xf32>
    %800 = vector.broadcast %799 : vector<1x4xf32> to vector<8x4xf32>
    %801 = arith.mulf %480, %800 : vector<8x4xf32>
    %802 = vector.extract_strided_slice %777 {offsets = [7, 0], sizes = [1, 4], strides = [1, 1]} : vector<8x4xf32> to vector<1x4xf32>
    %803 = vector.broadcast %802 : vector<1x4xf32> to vector<8x4xf32>
    %804 = arith.mulf %483, %803 : vector<8x4xf32>
    %805 = arith.addf %783, %786 : vector<8x4xf32>
    %806 = arith.addf %789, %792 : vector<8x4xf32>
    %807 = arith.addf %795, %798 : vector<8x4xf32>
    %808 = arith.addf %801, %804 : vector<8x4xf32>
    %809 = arith.addf %805, %806 : vector<8x4xf32>
    %810 = arith.addf %807, %808 : vector<8x4xf32>
    %811 = arith.addf %809, %810 : vector<8x4xf32>
    %812 = arith.addf %780, %811 : vector<8x4xf32>
    %cst_151 = arith.constant dense<0xFF800000> : vector<4xf32>
    %813 = vector.multi_reduction <maximumf>, %812, %cst_151 [0] : vector<8x4xf32> to vector<4xf32>
    %814 = vector.shape_cast %813 : vector<4xf32> to vector<1x4xf32>
    %815 = vector.broadcast %814 : vector<1x4xf32> to vector<8x4xf32>
    %816 = arith.cmpf oeq, %812, %815 : vector<8x4xf32>
    %c8_i32_152 = arith.constant 8 : i32
    %817 = vector.broadcast %c8_i32_152 : i32 to vector<8x4xi32>
    %818 = arith.select %816, %459, %817 : vector<8x4xi1>, vector<8x4xi32>
    %cst_153 = arith.constant dense<2147483647> : vector<4xi32>
    %819 = vector.multi_reduction <minsi>, %818, %cst_153 [0] : vector<8x4xi32> to vector<4xi32>
    %820 = vector.shape_cast %819 : vector<4xi32> to vector<1x4xi32>
    %821 = vector.broadcast %820 : vector<1x4xi32> to vector<8x4xi32>
    %822 = arith.cmpi eq, %459, %821 : vector<8x4xi32>
    %823 = arith.extui %822 : vector<8x4xi1> to vector<8x4xi32>
    %824 = arith.sitofp %823 : vector<8x4xi32> to vector<8x4xf32>
    %c2_154 = arith.constant 2 : index
    %c0_155 = arith.constant 0 : index
    %825 = vector.load %arg7[%c2_154, %c0_155] : memref<10x4xi32, #tpu.memory_space<vmem>>, vector<1x4xi32>
    tpu.vector_store %arg7[%c2_154, %c0_155], %820 {strides = array<i32>} : memref<10x4xi32, #tpu.memory_space<vmem>>, vector<1x4xi32>,
    %c1_156 = arith.constant 1 : index
    %c0_157 = arith.constant 0 : index
    %c0_158 = arith.constant 0 : index
    %826 = vector.load %arg1[%c1_156, %c0_157, %c0_158] : memref<10x8x4xf32, #tpu.memory_space<vmem>>, vector<1x8x4xf32>
    %827 = vector.shape_cast %826 : vector<1x8x4xf32> to vector<8x4xf32>
    %828 = vector.extract_strided_slice %824 {offsets = [0, 0], sizes = [1, 4], strides = [1, 1]} : vector<8x4xf32> to vector<1x4xf32>
    %829 = vector.broadcast %828 : vector<1x4xf32> to vector<8x4xf32>
    %830 = arith.mulf %462, %829 : vector<8x4xf32>
    %831 = vector.extract_strided_slice %824 {offsets = [1, 0], sizes = [1, 4], strides = [1, 1]} : vector<8x4xf32> to vector<1x4xf32>
    %832 = vector.broadcast %831 : vector<1x4xf32> to vector<8x4xf32>
    %833 = arith.mulf %465, %832 : vector<8x4xf32>
    %834 = vector.extract_strided_slice %824 {offsets = [2, 0], sizes = [1, 4], strides = [1, 1]} : vector<8x4xf32> to vector<1x4xf32>
    %835 = vector.broadcast %834 : vector<1x4xf32> to vector<8x4xf32>
    %836 = arith.mulf %468, %835 : vector<8x4xf32>
    %837 = vector.extract_strided_slice %824 {offsets = [3, 0], sizes = [1, 4], strides = [1, 1]} : vector<8x4xf32> to vector<1x4xf32>
    %838 = vector.broadcast %837 : vector<1x4xf32> to vector<8x4xf32>
    %839 = arith.mulf %471, %838 : vector<8x4xf32>
    %840 = vector.extract_strided_slice %824 {offsets = [4, 0], sizes = [1, 4], strides = [1, 1]} : vector<8x4xf32> to vector<1x4xf32>
    %841 = vector.broadcast %840 : vector<1x4xf32> to vector<8x4xf32>
    %842 = arith.mulf %474, %841 : vector<8x4xf32>
    %843 = vector.extract_strided_slice %824 {offsets = [5, 0], sizes = [1, 4], strides = [1, 1]} : vector<8x4xf32> to vector<1x4xf32>
    %844 = vector.broadcast %843 : vector<1x4xf32> to vector<8x4xf32>
    %845 = arith.mulf %477, %844 : vector<8x4xf32>
    %846 = vector.extract_strided_slice %824 {offsets = [6, 0], sizes = [1, 4], strides = [1, 1]} : vector<8x4xf32> to vector<1x4xf32>
    %847 = vector.broadcast %846 : vector<1x4xf32> to vector<8x4xf32>
    %848 = arith.mulf %480, %847 : vector<8x4xf32>
    %849 = vector.extract_strided_slice %824 {offsets = [7, 0], sizes = [1, 4], strides = [1, 1]} : vector<8x4xf32> to vector<1x4xf32>
    %850 = vector.broadcast %849 : vector<1x4xf32> to vector<8x4xf32>
    %851 = arith.mulf %483, %850 : vector<8x4xf32>
    %852 = arith.addf %830, %833 : vector<8x4xf32>
    %853 = arith.addf %836, %839 : vector<8x4xf32>
    %854 = arith.addf %842, %845 : vector<8x4xf32>
    %855 = arith.addf %848, %851 : vector<8x4xf32>
    %856 = arith.addf %852, %853 : vector<8x4xf32>
    %857 = arith.addf %854, %855 : vector<8x4xf32>
    %858 = arith.addf %856, %857 : vector<8x4xf32>
    %859 = arith.addf %827, %858 : vector<8x4xf32>
    %cst_159 = arith.constant dense<0xFF800000> : vector<4xf32>
    %860 = vector.multi_reduction <maximumf>, %859, %cst_159 [0] : vector<8x4xf32> to vector<4xf32>
    %861 = vector.shape_cast %860 : vector<4xf32> to vector<1x4xf32>
    %862 = vector.broadcast %861 : vector<1x4xf32> to vector<8x4xf32>
    %863 = arith.cmpf oeq, %859, %862 : vector<8x4xf32>
    %c8_i32_160 = arith.constant 8 : i32
    %864 = vector.broadcast %c8_i32_160 : i32 to vector<8x4xi32>
    %865 = arith.select %863, %459, %864 : vector<8x4xi1>, vector<8x4xi32>
    %cst_161 = arith.constant dense<2147483647> : vector<4xi32>
    %866 = vector.multi_reduction <minsi>, %865, %cst_161 [0] : vector<8x4xi32> to vector<4xi32>
    %867 = vector.shape_cast %866 : vector<4xi32> to vector<1x4xi32>
    %868 = vector.broadcast %867 : vector<1x4xi32> to vector<8x4xi32>
    %869 = arith.cmpi eq, %459, %868 : vector<8x4xi32>
    %870 = arith.extui %869 : vector<8x4xi1> to vector<8x4xi32>
    %871 = arith.sitofp %870 : vector<8x4xi32> to vector<8x4xf32>
    %c1_162 = arith.constant 1 : index
    %c0_163 = arith.constant 0 : index
    %872 = vector.load %arg7[%c1_162, %c0_163] : memref<10x4xi32, #tpu.memory_space<vmem>>, vector<1x4xi32>
    tpu.vector_store %arg7[%c1_162, %c0_163], %867 {strides = array<i32>} : memref<10x4xi32, #tpu.memory_space<vmem>>, vector<1x4xi32>,
    %c0_164 = arith.constant 0 : index
    %c0_165 = arith.constant 0 : index
    %c0_166 = arith.constant 0 : index
    %873 = vector.load %arg1[%c0_164, %c0_165, %c0_166] : memref<10x8x4xf32, #tpu.memory_space<vmem>>, vector<1x8x4xf32>
    %874 = vector.shape_cast %873 : vector<1x8x4xf32> to vector<8x4xf32>
    %875 = vector.extract_strided_slice %871 {offsets = [0, 0], sizes = [1, 4], strides = [1, 1]} : vector<8x4xf32> to vector<1x4xf32>
    %876 = vector.broadcast %875 : vector<1x4xf32> to vector<8x4xf32>
    %877 = arith.mulf %462, %876 : vector<8x4xf32>
    %878 = vector.extract_strided_slice %871 {offsets = [1, 0], sizes = [1, 4], strides = [1, 1]} : vector<8x4xf32> to vector<1x4xf32>
    %879 = vector.broadcast %878 : vector<1x4xf32> to vector<8x4xf32>
    %880 = arith.mulf %465, %879 : vector<8x4xf32>
    %881 = vector.extract_strided_slice %871 {offsets = [2, 0], sizes = [1, 4], strides = [1, 1]} : vector<8x4xf32> to vector<1x4xf32>
    %882 = vector.broadcast %881 : vector<1x4xf32> to vector<8x4xf32>
    %883 = arith.mulf %468, %882 : vector<8x4xf32>
    %884 = vector.extract_strided_slice %871 {offsets = [3, 0], sizes = [1, 4], strides = [1, 1]} : vector<8x4xf32> to vector<1x4xf32>
    %885 = vector.broadcast %884 : vector<1x4xf32> to vector<8x4xf32>
    %886 = arith.mulf %471, %885 : vector<8x4xf32>
    %887 = vector.extract_strided_slice %871 {offsets = [4, 0], sizes = [1, 4], strides = [1, 1]} : vector<8x4xf32> to vector<1x4xf32>
    %888 = vector.broadcast %887 : vector<1x4xf32> to vector<8x4xf32>
    %889 = arith.mulf %474, %888 : vector<8x4xf32>
    %890 = vector.extract_strided_slice %871 {offsets = [5, 0], sizes = [1, 4], strides = [1, 1]} : vector<8x4xf32> to vector<1x4xf32>
    %891 = vector.broadcast %890 : vector<1x4xf32> to vector<8x4xf32>
    %892 = arith.mulf %477, %891 : vector<8x4xf32>
    %893 = vector.extract_strided_slice %871 {offsets = [6, 0], sizes = [1, 4], strides = [1, 1]} : vector<8x4xf32> to vector<1x4xf32>
    %894 = vector.broadcast %893 : vector<1x4xf32> to vector<8x4xf32>
    %895 = arith.mulf %480, %894 : vector<8x4xf32>
    %896 = vector.extract_strided_slice %871 {offsets = [7, 0], sizes = [1, 4], strides = [1, 1]} : vector<8x4xf32> to vector<1x4xf32>
    %897 = vector.broadcast %896 : vector<1x4xf32> to vector<8x4xf32>
    %898 = arith.mulf %483, %897 : vector<8x4xf32>
    %899 = arith.addf %877, %880 : vector<8x4xf32>
    %900 = arith.addf %883, %886 : vector<8x4xf32>
    %901 = arith.addf %889, %892 : vector<8x4xf32>
    %902 = arith.addf %895, %898 : vector<8x4xf32>
    %903 = arith.addf %899, %900 : vector<8x4xf32>
    %904 = arith.addf %901, %902 : vector<8x4xf32>
    %905 = arith.addf %903, %904 : vector<8x4xf32>
    %906 = arith.addf %874, %905 : vector<8x4xf32>
    %cst_167 = arith.constant dense<0xFF800000> : vector<4xf32>
    %907 = vector.multi_reduction <maximumf>, %906, %cst_167 [0] : vector<8x4xf32> to vector<4xf32>
    %908 = vector.shape_cast %907 : vector<4xf32> to vector<1x4xf32>
    %909 = vector.broadcast %908 : vector<1x4xf32> to vector<8x4xf32>
    %910 = arith.cmpf oeq, %906, %909 : vector<8x4xf32>
    %c8_i32_168 = arith.constant 8 : i32
    %911 = vector.broadcast %c8_i32_168 : i32 to vector<8x4xi32>
    %912 = arith.select %910, %459, %911 : vector<8x4xi1>, vector<8x4xi32>
    %cst_169 = arith.constant dense<2147483647> : vector<4xi32>
    %913 = vector.multi_reduction <minsi>, %912, %cst_169 [0] : vector<8x4xi32> to vector<4xi32>
    %914 = vector.shape_cast %913 : vector<4xi32> to vector<1x4xi32>
    %c0_170 = arith.constant 0 : index
    %c0_171 = arith.constant 0 : index
    %915 = vector.load %arg7[%c0_170, %c0_171] : memref<10x4xi32, #tpu.memory_space<vmem>>, vector<1x4xi32>
    tpu.vector_store %arg7[%c0_170, %c0_171], %914 {strides = array<i32>} : memref<10x4xi32, #tpu.memory_space<vmem>>, vector<1x4xi32>,
    return
  }
  func.func @transform_0(%arg0: i32) -> (i32, i32, i32) {
    %c0_i32 = arith.constant 0 : i32
    %c0_i32_0 = arith.constant 0 : i32
    %c0_i32_1 = arith.constant 0 : i32
    return %c0_i32, %c0_i32_0, %arg0 : i32, i32, i32
  }
  func.func @transform_1(%arg0: i32) -> (i32, i32) {
    %c0_i32 = arith.constant 0 : i32
    %c0_i32_0 = arith.constant 0 : i32
    %c0_i32_1 = arith.constant 0 : i32
    return %c0_i32, %c0_i32_0 : i32, i32
  }
  func.func @transform_2(%arg0: i32) -> (i32, i32) {
    %c0_i32 = arith.constant 0 : i32
    %c0_i32_0 = arith.constant 0 : i32
    %c0_i32_1 = arith.constant 0 : i32
    return %c0_i32, %c0_i32_0 : i32, i32
  }
  func.func @transform_3(%arg0: i32) -> (i32, i32) {
    %c0_i32 = arith.constant 0 : i32
    %c0_i32_0 = arith.constant 0 : i32
    %c0_i32_1 = arith.constant 0 : i32
    return %c0_i32, %c0_i32_0 : i32, i32
  }
  func.func @transform_4(%arg0: i32) -> (i32, i32) {
    %c0_i32 = arith.constant 0 : i32
    %c0_i32_0 = arith.constant 0 : i32
    %c0_i32_1 = arith.constant 0 : i32
    return %c0_i32, %c0_i32_0 : i32, i32
  }
  func.func @transform_5(%arg0: i32) -> (i32, i32) {
    %c0_i32 = arith.constant 0 : i32
    %c0_i32_0 = arith.constant 0 : i32
    %c0_i32_1 = arith.constant 0 : i32
    return %c0_i32, %c0_i32_0 : i32, i32
  }
  func.func @transform_6(%arg0: i32) -> (i32, i32) {
    %c0_i32 = arith.constant 0 : i32
    %c0_i32_0 = arith.constant 0 : i32
    return %c0_i32, %arg0 : i32, i32
  }
}

</mosaic_0001>

<llo_original>
// kernel: crf_map.1
$region0: #{crf_map.1}
  #allocation0 [shape = 'u32[]', space=smem, size = 0x4, offset = 0x4, fixed_abs, tag = 'smem constant byte address 0x4 - core index']
  #allocation1 [shape = 'u32[72,128]{1,0:T(1,128)}', space=vmem, size = 0x9000, scoped, tag = 'internal scratch']
  %s0 = inlined_call_operand.vmem [shape: f32[10,8,4], index: 0, kind: input, shape index: {}]
  %s1 = inlined_call_operand.vmem [shape: f32[8,8], index: 1, kind: input, shape index: {}]
  %s2 = inlined_call_operand.vmem [shape: f32[8,1], index: 2, kind: input, shape index: {}]
  %s3 = inlined_call_operand.vmem [shape: f32[8,8], index: 3, kind: input, shape index: {}]
  %s4 = inlined_call_operand.vmem [shape: f32[8,1], index: 4, kind: input, shape index: {}]
  %s5 = inlined_call_operand.vmem [shape: f32[8,1], index: 5, kind: input, shape index: {}]
  %s6 = inlined_call_operand.vmem [shape: s32[10,4], index: 6, kind: output, shape index: {}]
  %s7 = sld [smem:[#allocation0]]
  $region34: #{crf_map.1} parent=0
    _
  %s9 = ssub.s32 1, %s7
  %s10 = scalar_select 0, %s9, %s7
  // Predicated region
  $region2: #{crf_map.1} parent=0 // pred_check
    _
  $region3: #{crf_map.1} parent=0 // pred_check_branch
    %12 = sbr.rel (0) target = $region5
  $region4: #{crf_map.1} parent=0 // pred_region
    _
  $region5: #{crf_map.1} parent=0 // pred_fallthru
    _
  // Predicated region
  $region6: #{crf_map.1} parent=0 // pred_check
    _
  $region7: #{crf_map.1} parent=0 // pred_check_branch
    %14 = sbr.rel (0) target = $region9
  $region8: #{crf_map.1} parent=0 // pred_region
    _
  $region9: #{crf_map.1} parent=0 // pred_fallthru
    _
  // Predicated region
  $region10: #{crf_map.1} parent=0 // pred_check
    _
  $region11: #{crf_map.1} parent=0 // pred_check_branch
    %16 = sbr.rel (0) target = $region13
  $region12: #{crf_map.1} parent=0 // pred_region
    _
  $region13: #{crf_map.1} parent=0 // pred_fallthru
    _
  // Predicated region
  $region14: #{crf_map.1} parent=0 // pred_check
    _
  $region15: #{crf_map.1} parent=0 // pred_check_branch
    %18 = sbr.rel (0) target = $region17
  $region16: #{crf_map.1} parent=0 // pred_region
    _
  $region17: #{crf_map.1} parent=0 // pred_fallthru
    _
  // Predicated region
  $region18: #{crf_map.1} parent=0 // pred_check
    _
  $region19: #{crf_map.1} parent=0 // pred_check_branch
    %20 = sbr.rel (0) target = $region21
  $region20: #{crf_map.1} parent=0 // pred_region
    _
  $region21: #{crf_map.1} parent=0 // pred_fallthru
    _
  // Predicated region
  $region22: #{crf_map.1} parent=0 // pred_check
    _
  $region23: #{crf_map.1} parent=0 // pred_check_branch
    %22 = sbr.rel (0) target = $region25
  $region24: #{crf_map.1} parent=0 // pred_region
    _
  $region25: #{crf_map.1} parent=0 // pred_fallthru
    _
  %v23 = vld [vmem:[%s2] sm:$0xff]
  %v24 = vld [vmem:[%s4] sm:$0xff]
  %v25 = vld [vmem:[%s5] sm:$0xff]
  %v26 = vld [vmem:[%s1] sm:$0xff]
  %28 = vset.pattern.permute.xlu0 0
  %29 = vperm.xlu0 %28, %v26
  %v30 = vpop.permute.xlu0 %29
  %32 = vset.pattern.permute.xlu0 1
  %33 = vperm.xlu0 %32, %v26
  %v34 = vpop.permute.xlu0 %33
  %36 = vset.pattern.permute.xlu0 2
  %37 = vperm.xlu0 %36, %v26
  %v38 = vpop.permute.xlu0 %37
  %40 = vset.pattern.permute.xlu0 3
  %41 = vperm.xlu0 %40, %v26
  %v42 = vpop.permute.xlu0 %41
  %44 = vset.pattern.permute.xlu0 4
  %45 = vperm.xlu0 %44, %v26
  %v46 = vpop.permute.xlu0 %45
  %48 = vset.pattern.permute.xlu0 5
  %49 = vperm.xlu0 %48, %v26
  %v50 = vpop.permute.xlu0 %49
  %52 = vset.pattern.permute.xlu0 6
  %53 = vperm.xlu0 %52, %v26
  %v54 = vpop.permute.xlu0 %53
  %56 = vset.pattern.permute.xlu0 7
  %57 = vperm.xlu0 %56, %v26
  %v58 = vpop.permute.xlu0 %57
  %v60 = vld [vmem:[%s0] sm:$0xff]
  %62 = vset.pattern.permute.xlu0 0
  %63 = vperm.xlu0 %62, %v24
  %v64 = vpop.permute.xlu0 %63
  %v66 = vadd.f32 %v60, %v64
  %vm67 = vcmask 31744
  %68 = vst.msk [vmem:[%s0] sm:$0xff] %vm67, %v66
  %s69 = scalar_lea.vmem %s0, 8
  %v70 = vld [vmem:[%s69] sm:$0xff]
  %v71 = vsel %vm67, %v66, -inf
  %v72 = vrot.slane %v71, 4
  %v73 = vmax.f32 %v71, %v72
  %v74 = vrot.slane %v73, 2
  %v75 = vmax.f32 %v73, %v74
  %v76 = vrot.slane %v75, 1
  %v77 = vmax.f32 %v75, %v76
  %v78 = vsub.f32 %v66, %v77
  %v79 = vmul.f32 %v78, 1.442695
  %v80 = vpow.pop %v79
  %82 = vset.pattern.permute.xlu0 0
  %83 = vperm.xlu0 %82, %v23
  %v84 = vpop.permute.xlu0 %83
  %v86 = vadd.f32 %v77, %v84
  %v87 = vperm.slane %v80, 0
  %v88 = vmul.f32 %v30, %v87
  %v89 = vperm.slane %v80, 1
  %v90 = vmul.f32 %v34, %v89
  %v91 = vperm.slane %v80, 2
  %v92 = vmul.f32 %v38, %v91
  %v93 = vperm.slane %v80, 3
  %v94 = vmul.f32 %v42, %v93
  %v95 = vperm.slane %v80, 4
  %v96 = vmul.f32 %v46, %v95
  %v97 = vperm.slane %v80, 5
  %v98 = vmul.f32 %v50, %v97
  %v99 = vperm.slane %v80, 6
  %v100 = vmul.f32 %v54, %v99
  %v101 = vperm.slane %v80, 7
  %v102 = vmul.f32 %v58, %v101
  %v103 = vadd.f32 %v88, %v90
  %v104 = vadd.f32 %v92, %v94
  %v105 = vadd.f32 %v96, %v98
  %v106 = vadd.f32 %v100, %v102
  %v107 = vadd.f32 %v103, %v104
  %v108 = vadd.f32 %v105, %v106
  %v109 = vadd.f32 %v107, %v108
  %v110 = vlog2.pop %v109
  %v111 = vmul.f32 %v110, 0.6931472
  %v112 = vadd.f32 %v86, %v111
  %v113 = vadd.f32 %v70, %v112
  %114 = vst.msk [vmem:[%s69] sm:$0xff] %vm67, %v113
  %s115 = scalar_lea.vmem %s0, 16
  %v116 = vld [vmem:[%s115] sm:$0xff]
  %v117 = vsel %vm67, %v113, -inf
  %v118 = vrot.slane %v117, 4
  %v119 = vmax.f32 %v117, %v118
  %v120 = vrot.slane %v119, 2
  %v121 = vmax.f32 %v119, %v120
  %v122 = vrot.slane %v121, 1
  %v123 = vmax.f32 %v121, %v122
  %v124 = vsub.f32 %v113, %v123
  %v125 = vmul.f32 %v124, 1.442695
  %v126 = vpow.pop %v125
  %v127 = vadd.f32 %v123, %v84
  %v128 = vperm.slane %v126, 0
  %v129 = vmul.f32 %v30, %v128
  %v130 = vperm.slane %v126, 1
  %v131 = vmul.f32 %v34, %v130
  %v132 = vperm.slane %v126, 2
  %v133 = vmul.f32 %v38, %v132
  %v134 = vperm.slane %v126, 3
  %v135 = vmul.f32 %v42, %v134
  %v136 = vperm.slane %v126, 4
  %v137 = vmul.f32 %v46, %v136
  %v138 = vperm.slane %v126, 5
  %v139 = vmul.f32 %v50, %v138
  %v140 = vperm.slane %v126, 6
  %v141 = vmul.f32 %v54, %v140
  %v142 = vperm.slane %v126, 7
  %v143 = vmul.f32 %v58, %v142
  %v144 = vadd.f32 %v129, %v131
  %v145 = vadd.f32 %v133, %v135
  %v146 = vadd.f32 %v137, %v139
  %v147 = vadd.f32 %v141, %v143
  %v148 = vadd.f32 %v144, %v145
  %v149 = vadd.f32 %v146, %v147
  %v150 = vadd.f32 %v148, %v149
  %v151 = vlog2.pop %v150
  %v152 = vmul.f32 %v151, 0.6931472
  %v153 = vadd.f32 %v127, %v152
  %v154 = vadd.f32 %v116, %v153
  %155 = vst.msk [vmem:[%s115] sm:$0xff] %vm67, %v154
  %s156 = scalar_lea.vmem %s0, 24
  %v157 = vld [vmem:[%s156] sm:$0xff]
  %v158 = vsel %vm67, %v154, -inf
  %v159 = vrot.slane %v158, 4
  %v160 = vmax.f32 %v158, %v159
  %v161 = vrot.slane %v160, 2
  %v162 = vmax.f32 %v160, %v161
  %v163 = vrot.slane %v162, 1
  %v164 = vmax.f32 %v162, %v163
  %v165 = vsub.f32 %v154, %v164
  %v166 = vmul.f32 %v165, 1.442695
  %v167 = vpow.pop %v166
  %v168 = vadd.f32 %v164, %v84
  %v169 = vperm.slane %v167, 0
  %v170 = vmul.f32 %v30, %v169
  %v171 = vperm.slane %v167, 1
  %v172 = vmul.f32 %v34, %v171
  %v173 = vperm.slane %v167, 2
  %v174 = vmul.f32 %v38, %v173
  %v175 = vperm.slane %v167, 3
  %v176 = vmul.f32 %v42, %v175
  %v177 = vperm.slane %v167, 4
  %v178 = vmul.f32 %v46, %v177
  %v179 = vperm.slane %v167, 5
  %v180 = vmul.f32 %v50, %v179
  %v181 = vperm.slane %v167, 6
  %v182 = vmul.f32 %v54, %v181
  %v183 = vperm.slane %v167, 7
  %v184 = vmul.f32 %v58, %v183
  %v185 = vadd.f32 %v170, %v172
  %v186 = vadd.f32 %v174, %v176
  %v187 = vadd.f32 %v178, %v180
  %v188 = vadd.f32 %v182, %v184
  %v189 = vadd.f32 %v185, %v186
  %v190 = vadd.f32 %v187, %v188
  %v191 = vadd.f32 %v189, %v190
  %v192 = vlog2.pop %v191
  %v193 = vmul.f32 %v192, 0.6931472
  %v194 = vadd.f32 %v168, %v193
  %v195 = vadd.f32 %v157, %v194
  %196 = vst.msk [vmem:[%s156] sm:$0xff] %vm67, %v195
  %s197 = scalar_lea.vmem %s0, 32
  %v198 = vld [vmem:[%s197] sm:$0xff]
  %v199 = vsel %vm67, %v195, -inf
  %v200 = vrot.slane %v199, 4
  %v201 = vmax.f32 %v199, %v200
  %v202 = vrot.slane %v201, 2
  %v203 = vmax.f32 %v201, %v202
  %v204 = vrot.slane %v203, 1
  %v205 = vmax.f32 %v203, %v204
  %v206 = vsub.f32 %v195, %v205
  %v207 = vmul.f32 %v206, 1.442695
  %v208 = vpow.pop %v207
  %v209 = vadd.f32 %v205, %v84
  %v210 = vperm.slane %v208, 0
  %v211 = vmul.f32 %v30, %v210
  %v212 = vperm.slane %v208, 1
  %v213 = vmul.f32 %v34, %v212
  %v214 = vperm.slane %v208, 2
  %v215 = vmul.f32 %v38, %v214
  %v216 = vperm.slane %v208, 3
  %v217 = vmul.f32 %v42, %v216
  %v218 = vperm.slane %v208, 4
  %v219 = vmul.f32 %v46, %v218
  %v220 = vperm.slane %v208, 5
  %v221 = vmul.f32 %v50, %v220
  %v222 = vperm.slane %v208, 6
  %v223 = vmul.f32 %v54, %v222
  %v224 = vperm.slane %v208, 7
  %v225 = vmul.f32 %v58, %v224
  %v226 = vadd.f32 %v211, %v213
  %v227 = vadd.f32 %v215, %v217
  %v228 = vadd.f32 %v219, %v221
  %v229 = vadd.f32 %v223, %v225
  %v230 = vadd.f32 %v226, %v227
  %v231 = vadd.f32 %v228, %v229
  %v232 = vadd.f32 %v230, %v231
  %v233 = vlog2.pop %v232
  %v234 = vmul.f32 %v233, 0.6931472
  %v235 = vadd.f32 %v209, %v234
  %v236 = vadd.f32 %v198, %v235
  %237 = vst.msk [vmem:[%s197] sm:$0xff] %vm67, %v236
  %s238 = scalar_lea.vmem %s0, 40
  %v239 = vld [vmem:[%s238] sm:$0xff]
  %v240 = vsel %vm67, %v236, -inf
  %v241 = vrot.slane %v240, 4
  %v242 = vmax.f32 %v240, %v241
  %v243 = vrot.slane %v242, 2
  %v244 = vmax.f32 %v242, %v243
  %v245 = vrot.slane %v244, 1
  %v246 = vmax.f32 %v244, %v245
  %v247 = vsub.f32 %v236, %v246
  %v248 = vmul.f32 %v247, 1.442695
  %v249 = vpow.pop %v248
  %v250 = vadd.f32 %v246, %v84
  %v251 = vperm.slane %v249, 0
  %v252 = vmul.f32 %v30, %v251
  %v253 = vperm.slane %v249, 1
  %v254 = vmul.f32 %v34, %v253
  %v255 = vperm.slane %v249, 2
  %v256 = vmul.f32 %v38, %v255
  %v257 = vperm.slane %v249, 3
  %v258 = vmul.f32 %v42, %v257
  %v259 = vperm.slane %v249, 4
  %v260 = vmul.f32 %v46, %v259
  %v261 = vperm.slane %v249, 5
  %v262 = vmul.f32 %v50, %v261
  %v263 = vperm.slane %v249, 6
  %v264 = vmul.f32 %v54, %v263
  %v265 = vperm.slane %v249, 7
  %v266 = vmul.f32 %v58, %v265
  %v267 = vadd.f32 %v252, %v254
  %v268 = vadd.f32 %v256, %v258
  %v269 = vadd.f32 %v260, %v262
  %v270 = vadd.f32 %v264, %v266
  %v271 = vadd.f32 %v267, %v268
  %v272 = vadd.f32 %v269, %v270
  %v273 = vadd.f32 %v271, %v272
  %v274 = vlog2.pop %v273
  %v275 = vmul.f32 %v274, 0.6931472
  %v276 = vadd.f32 %v250, %v275
  %v277 = vadd.f32 %v239, %v276
  %278 = vst.msk [vmem:[%s238] sm:$0xff] %vm67, %v277
  %s279 = scalar_lea.vmem %s0, 48
  %v280 = vld [vmem:[%s279] sm:$0xff]
  %v281 = vsel %vm67, %v277, -inf
  %v282 = vrot.slane %v281, 4
  %v283 = vmax.f32 %v281, %v282
  %v284 = vrot.slane %v283, 2
  %v285 = vmax.f32 %v283, %v284
  %v286 = vrot.slane %v285, 1
  %v287 = vmax.f32 %v285, %v286
  %v288 = vsub.f32 %v277, %v287
  %v289 = vmul.f32 %v288, 1.442695
  %v290 = vpow.pop %v289
  %v291 = vadd.f32 %v287, %v84
  %v292 = vperm.slane %v290, 0
  %v293 = vmul.f32 %v30, %v292
  %v294 = vperm.slane %v290, 1
  %v295 = vmul.f32 %v34, %v294
  %v296 = vperm.slane %v290, 2
  %v297 = vmul.f32 %v38, %v296
  %v298 = vperm.slane %v290, 3
  %v299 = vmul.f32 %v42, %v298
  %v300 = vperm.slane %v290, 4
  %v301 = vmul.f32 %v46, %v300
  %v302 = vperm.slane %v290, 5
  %v303 = vmul.f32 %v50, %v302
  %v304 = vperm.slane %v290, 6
  %v305 = vmul.f32 %v54, %v304
  %v306 = vperm.slane %v290, 7
  %v307 = vmul.f32 %v58, %v306
  %v308 = vadd.f32 %v293, %v295
  %v309 = vadd.f32 %v297, %v299
  %v310 = vadd.f32 %v301, %v303
  %v311 = vadd.f32 %v305, %v307
  %v312 = vadd.f32 %v308, %v309
  %v313 = vadd.f32 %v310, %v311
  %v314 = vadd.f32 %v312, %v313
  %v315 = vlog2.pop %v314
  %v316 = vmul.f32 %v315, 0.6931472
  %v317 = vadd.f32 %v291, %v316
  %v318 = vadd.f32 %v280, %v317
  %319 = vst.msk [vmem:[%s279] sm:$0xff] %vm67, %v318
  %s320 = scalar_lea.vmem %s0, 56
  %v321 = vld [vmem:[%s320] sm:$0xff]
  %v322 = vsel %vm67, %v318, -inf
  %v323 = vrot.slane %v322, 4
  %v324 = vmax.f32 %v322, %v323
  %v325 = vrot.slane %v324, 2
  %v326 = vmax.f32 %v324, %v325
  %v327 = vrot.slane %v326, 1
  %v328 = vmax.f32 %v326, %v327
  %v329 = vsub.f32 %v318, %v328
  %v330 = vmul.f32 %v329, 1.442695
  %v331 = vpow.pop %v330
  %v332 = vadd.f32 %v328, %v84
  %v333 = vperm.slane %v331, 0
  %v334 = vmul.f32 %v30, %v333
  %v335 = vperm.slane %v331, 1
  %v336 = vmul.f32 %v34, %v335
  %v337 = vperm.slane %v331, 2
  %v338 = vmul.f32 %v38, %v337
  %v339 = vperm.slane %v331, 3
  %v340 = vmul.f32 %v42, %v339
  %v341 = vperm.slane %v331, 4
  %v342 = vmul.f32 %v46, %v341
  %v343 = vperm.slane %v331, 5
  %v344 = vmul.f32 %v50, %v343
  %v345 = vperm.slane %v331, 6
  %v346 = vmul.f32 %v54, %v345
  %v347 = vperm.slane %v331, 7
  %v348 = vmul.f32 %v58, %v347
  %v349 = vadd.f32 %v334, %v336
  %v350 = vadd.f32 %v338, %v340
  %v351 = vadd.f32 %v342, %v344
  %v352 = vadd.f32 %v346, %v348
  %v353 = vadd.f32 %v349, %v350
  %v354 = vadd.f32 %v351, %v352
  %v355 = vadd.f32 %v353, %v354
  %v356 = vlog2.pop %v355
  %v357 = vmul.f32 %v356, 0.6931472
  %v358 = vadd.f32 %v332, %v357
  %v359 = vadd.f32 %v321, %v358
  %360 = vst.msk [vmem:[%s320] sm:$0xff] %vm67, %v359
  %s361 = scalar_lea.vmem %s0, 64
  %v362 = vld [vmem:[%s361] sm:$0xff]
  %v363 = vsel %vm67, %v359, -inf
  %v364 = vrot.slane %v363, 4
  %v365 = vmax.f32 %v363, %v364
  %v366 = vrot.slane %v365, 2
  %v367 = vmax.f32 %v365, %v366
  %v368 = vrot.slane %v367, 1
  %v369 = vmax.f32 %v367, %v368
  %v370 = vsub.f32 %v359, %v369
  %v371 = vmul.f32 %v370, 1.442695
  %v372 = vpow.pop %v371
  %v373 = vadd.f32 %v369, %v84
  %v374 = vperm.slane %v372, 0
  %v375 = vmul.f32 %v30, %v374
  %v376 = vperm.slane %v372, 1
  %v377 = vmul.f32 %v34, %v376
  %v378 = vperm.slane %v372, 2
  %v379 = vmul.f32 %v38, %v378
  %v380 = vperm.slane %v372, 3
  %v381 = vmul.f32 %v42, %v380
  %v382 = vperm.slane %v372, 4
  %v383 = vmul.f32 %v46, %v382
  %v384 = vperm.slane %v372, 5
  %v385 = vmul.f32 %v50, %v384
  %v386 = vperm.slane %v372, 6
  %v387 = vmul.f32 %v54, %v386
  %v388 = vperm.slane %v372, 7
  %v389 = vmul.f32 %v58, %v388
  %v390 = vadd.f32 %v375, %v377
  %v391 = vadd.f32 %v379, %v381
  %v392 = vadd.f32 %v383, %v385
  %v393 = vadd.f32 %v387, %v389
  %v394 = vadd.f32 %v390, %v391
  %v395 = vadd.f32 %v392, %v393
  %v396 = vadd.f32 %v394, %v395
  %v397 = vlog2.pop %v396
  %v398 = vmul.f32 %v397, 0.6931472
  %v399 = vadd.f32 %v373, %v398
  %v400 = vadd.f32 %v362, %v399
  %401 = vst.msk [vmem:[%s361] sm:$0xff] %vm67, %v400
  %s402 = scalar_lea.vmem %s0, 72
  %v403 = vld [vmem:[%s402] sm:$0xff]
  %v404 = vsel %vm67, %v400, -inf
  %v405 = vrot.slane %v404, 4
  %v406 = vmax.f32 %v404, %v405
  %v407 = vrot.slane %v406, 2
  %v408 = vmax.f32 %v406, %v407
  %v409 = vrot.slane %v408, 1
  %v410 = vmax.f32 %v408, %v409
  %v411 = vsub.f32 %v400, %v410
  %v412 = vmul.f32 %v411, 1.442695
  %v413 = vpow.pop %v412
  %v414 = vadd.f32 %v410, %v84
  %v415 = vperm.slane %v413, 0
  %v416 = vmul.f32 %v30, %v415
  %v417 = vperm.slane %v413, 1
  %v418 = vmul.f32 %v34, %v417
  %v419 = vperm.slane %v413, 2
  %v420 = vmul.f32 %v38, %v419
  %v421 = vperm.slane %v413, 3
  %v422 = vmul.f32 %v42, %v421
  %v423 = vperm.slane %v413, 4
  %v424 = vmul.f32 %v46, %v423
  %v425 = vperm.slane %v413, 5
  %v426 = vmul.f32 %v50, %v425
  %v427 = vperm.slane %v413, 6
  %v428 = vmul.f32 %v54, %v427
  %v429 = vperm.slane %v413, 7
  %v430 = vmul.f32 %v58, %v429
  %v431 = vadd.f32 %v416, %v418
  %v432 = vadd.f32 %v420, %v422
  %v433 = vadd.f32 %v424, %v426
  %v434 = vadd.f32 %v428, %v430
  %v435 = vadd.f32 %v431, %v432
  %v436 = vadd.f32 %v433, %v434
  %v437 = vadd.f32 %v435, %v436
  %v438 = vlog2.pop %v437
  %v439 = vmul.f32 %v438, 0.6931472
  %v440 = vadd.f32 %v414, %v439
  %v441 = vadd.f32 %v403, %v440
  %442 = vst.msk [vmem:[%s402] sm:$0xff] %vm67, %v441
  %444 = vset.pattern.permute.xlu0 0
  %445 = vperm.xlu0 %444, %v25
  %v446 = vpop.permute.xlu0 %445
  %v448 = vadd.f32 %v441, %v446
  %v449 = vlaneseq
  %v450 = vshrl.u32 %v449, 7
  %v451 = vld [vmem:[%s3] sm:$0xff]
  %453 = vset.pattern.permute.xlu0 0
  %454 = vperm.xlu0 %453, %v451
  %v455 = vpop.permute.xlu0 %454
  %457 = vset.pattern.permute.xlu0 1
  %458 = vperm.xlu0 %457, %v451
  %v459 = vpop.permute.xlu0 %458
  %461 = vset.pattern.permute.xlu0 2
  %462 = vperm.xlu0 %461, %v451
  %v463 = vpop.permute.xlu0 %462
  %465 = vset.pattern.permute.xlu0 3
  %466 = vperm.xlu0 %465, %v451
  %v467 = vpop.permute.xlu0 %466
  %469 = vset.pattern.permute.xlu0 4
  %470 = vperm.xlu0 %469, %v451
  %v471 = vpop.permute.xlu0 %470
  %473 = vset.pattern.permute.xlu0 5
  %474 = vperm.xlu0 %473, %v451
  %v475 = vpop.permute.xlu0 %474
  %477 = vset.pattern.permute.xlu0 6
  %478 = vperm.xlu0 %477, %v451
  %v479 = vpop.permute.xlu0 %478
  %481 = vset.pattern.permute.xlu0 7
  %482 = vperm.xlu0 %481, %v451
  %v483 = vpop.permute.xlu0 %482
  %v485 = vsel %vm67, %v448, -inf
  %v486 = vrot.slane %v485, 4
  %v487 = vmax.f32 %v485, %v486
  %v488 = vrot.slane %v487, 2
  %v489 = vmax.f32 %v487, %v488
  %v490 = vrot.slane %v489, 1
  %v491 = vmax.f32 %v489, %v490
  %vm492 = vcmp.eq.f32.partialorder %v448, %v491
  %v493 = vsel %vm492, %v450, 8
  %v494 = vsel %vm67, %v493, 2147483647
  %v495 = vrot.slane %v494, 4
  %vm496 = vcmp.lt.s32.totalorder %v494, %v495
  %v497 = vsel %vm496, %v494, %v495
  %v498 = vrot.slane %v497, 2
  %vm499 = vcmp.lt.s32.totalorder %v497, %v498
  %v500 = vsel %vm499, %v497, %v498
  %v501 = vrot.slane %v500, 1
  %vm502 = vcmp.lt.s32.totalorder %v500, %v501
  %v503 = vsel %vm502, %v500, %v501
  %vm504 = vcmp.eq.s32.totalorder %v450, %v503
  %v505 = vsel %vm504, 1, 0
  %v506 = vcvt.s32.f32 %v505
  %vm507 = vcmask 24576
  %508 = vst.msk [vmem:[%s6 + $0x9] sm:$0x1] %vm507, %v503
  %v509 = vld [vmem:[%s361] sm:$0xff]
  %v510 = vperm.slane %v506, 0
  %v511 = vmul.f32 %v455, %v510
  %v512 = vperm.slane %v506, 1
  %v513 = vmul.f32 %v459, %v512
  %v514 = vperm.slane %v506, 2
  %v515 = vmul.f32 %v463, %v514
  %v516 = vperm.slane %v506, 3
  %v517 = vmul.f32 %v467, %v516
  %v518 = vperm.slane %v506, 4
  %v519 = vmul.f32 %v471, %v518
  %v520 = vperm.slane %v506, 5
  %v521 = vmul.f32 %v475, %v520
  %v522 = vperm.slane %v506, 6
  %v523 = vmul.f32 %v479, %v522
  %v524 = vperm.slane %v506, 7
  %v525 = vmul.f32 %v483, %v524
  %v526 = vadd.f32 %v511, %v513
  %v527 = vadd.f32 %v515, %v517
  %v528 = vadd.f32 %v519, %v521
  %v529 = vadd.f32 %v523, %v525
  %v530 = vadd.f32 %v526, %v527
  %v531 = vadd.f32 %v528, %v529
  %v532 = vadd.f32 %v530, %v531
  %v533 = vadd.f32 %v509, %v532
  %v534 = vsel %vm67, %v533, -inf
  %v535 = vrot.slane %v534, 4
  %v536 = vmax.f32 %v534, %v535
  %v537 = vrot.slane %v536, 2
  %v538 = vmax.f32 %v536, %v537
  %v539 = vrot.slane %v538, 1
  %v540 = vmax.f32 %v538, %v539
  %vm541 = vcmp.eq.f32.partialorder %v533, %v540
  %v542 = vsel %vm541, %v450, 8
  %v543 = vsel %vm67, %v542, 2147483647
  %v544 = vrot.slane %v543, 4
  %vm545 = vcmp.lt.s32.totalorder %v543, %v544
  %v546 = vsel %vm545, %v543, %v544
  %v547 = vrot.slane %v546, 2
  %vm548 = vcmp.lt.s32.totalorder %v546, %v547
  %v549 = vsel %vm548, %v546, %v547
  %v550 = vrot.slane %v549, 1
  %vm551 = vcmp.lt.s32.totalorder %v549, %v550
  %v552 = vsel %vm551, %v549, %v550
  %vm553 = vcmp.eq.s32.totalorder %v450, %v552
  %v554 = vsel %vm553, 1, 0
  %v555 = vcvt.s32.f32 %v554
  %556 = vst.msk [vmem:[%s6 + $0x8] sm:$0x1] %vm507, %v552
  %v557 = vld [vmem:[%s320] sm:$0xff]
  %v558 = vperm.slane %v555, 0
  %v559 = vmul.f32 %v455, %v558
  %v560 = vperm.slane %v555, 1
  %v561 = vmul.f32 %v459, %v560
  %v562 = vperm.slane %v555, 2
  %v563 = vmul.f32 %v463, %v562
  %v564 = vperm.slane %v555, 3
  %v565 = vmul.f32 %v467, %v564
  %v566 = vperm.slane %v555, 4
  %v567 = vmul.f32 %v471, %v566
  %v568 = vperm.slane %v555, 5
  %v569 = vmul.f32 %v475, %v568
  %v570 = vperm.slane %v555, 6
  %v571 = vmul.f32 %v479, %v570
  %v572 = vperm.slane %v555, 7
  %v573 = vmul.f32 %v483, %v572
  %v574 = vadd.f32 %v559, %v561
  %v575 = vadd.f32 %v563, %v565
  %v576 = vadd.f32 %v567, %v569
  %v577 = vadd.f32 %v571, %v573
  %v578 = vadd.f32 %v574, %v575
  %v579 = vadd.f32 %v576, %v577
  %v580 = vadd.f32 %v578, %v579
  %v581 = vadd.f32 %v557, %v580
  %v582 = vsel %vm67, %v581, -inf
  %v583 = vrot.slane %v582, 4
  %v584 = vmax.f32 %v582, %v583
  %v585 = vrot.slane %v584, 2
  %v586 = vmax.f32 %v584, %v585
  %v587 = vrot.slane %v586, 1
  %v588 = vmax.f32 %v586, %v587
  %vm589 = vcmp.eq.f32.partialorder %v581, %v588
  %v590 = vsel %vm589, %v450, 8
  %v591 = vsel %vm67, %v590, 2147483647
  %v592 = vrot.slane %v591, 4
  %vm593 = vcmp.lt.s32.totalorder %v591, %v592
  %v594 = vsel %vm593, %v591, %v592
  %v595 = vrot.slane %v594, 2
  %vm596 = vcmp.lt.s32.totalorder %v594, %v595
  %v597 = vsel %vm596, %v594, %v595
  %v598 = vrot.slane %v597, 1
  %vm599 = vcmp.lt.s32.totalorder %v597, %v598
  %v600 = vsel %vm599, %v597, %v598
  %vm601 = vcmp.eq.s32.totalorder %v450, %v600
  %v602 = vsel %vm601, 1, 0
  %v603 = vcvt.s32.f32 %v602
  %604 = vst.msk [vmem:[%s6 + $0x7] sm:$0x1] %vm507, %v600
  %v605 = vld [vmem:[%s279] sm:$0xff]
  %v606 = vperm.slane %v603, 0
  %v607 = vmul.f32 %v455, %v606
  %v608 = vperm.slane %v603, 1
  %v609 = vmul.f32 %v459, %v608
  %v610 = vperm.slane %v603, 2
  %v611 = vmul.f32 %v463, %v610
  %v612 = vperm.slane %v603, 3
  %v613 = vmul.f32 %v467, %v612
  %v614 = vperm.slane %v603, 4
  %v615 = vmul.f32 %v471, %v614
  %v616 = vperm.slane %v603, 5
  %v617 = vmul.f32 %v475, %v616
  %v618 = vperm.slane %v603, 6
  %v619 = vmul.f32 %v479, %v618
  %v620 = vperm.slane %v603, 7
  %v621 = vmul.f32 %v483, %v620
  %v622 = vadd.f32 %v607, %v609
  %v623 = vadd.f32 %v611, %v613
  %v624 = vadd.f32 %v615, %v617
  %v625 = vadd.f32 %v619, %v621
  %v626 = vadd.f32 %v622, %v623
  %v627 = vadd.f32 %v624, %v625
  %v628 = vadd.f32 %v626, %v627
  %v629 = vadd.f32 %v605, %v628
  %v630 = vsel %vm67, %v629, -inf
  %v631 = vrot.slane %v630, 4
  %v632 = vmax.f32 %v630, %v631
  %v633 = vrot.slane %v632, 2
  %v634 = vmax.f32 %v632, %v633
  %v635 = vrot.slane %v634, 1
  %v636 = vmax.f32 %v634, %v635
  %vm637 = vcmp.eq.f32.partialorder %v629, %v636
  %v638 = vsel %vm637, %v450, 8
  %v639 = vsel %vm67, %v638, 2147483647
  %v640 = vrot.slane %v639, 4
  %vm641 = vcmp.lt.s32.totalorder %v639, %v640
  %v642 = vsel %vm641, %v639, %v640
  %v643 = vrot.slane %v642, 2
  %vm644 = vcmp.lt.s32.totalorder %v642, %v643
  %v645 = vsel %vm644, %v642, %v643
  %v646 = vrot.slane %v645, 1
  %vm647 = vcmp.lt.s32.totalorder %v645, %v646
  %v648 = vsel %vm647, %v645, %v646
  %vm649 = vcmp.eq.s32.totalorder %v450, %v648
  %v650 = vsel %vm649, 1, 0
  %v651 = vcvt.s32.f32 %v650
  %652 = vst.msk [vmem:[%s6 + $0x6] sm:$0x1] %vm507, %v648
  %v653 = vld [vmem:[%s238] sm:$0xff]
  %v654 = vperm.slane %v651, 0
  %v655 = vmul.f32 %v455, %v654
  %v656 = vperm.slane %v651, 1
  %v657 = vmul.f32 %v459, %v656
  %v658 = vperm.slane %v651, 2
  %v659 = vmul.f32 %v463, %v658
  %v660 = vperm.slane %v651, 3
  %v661 = vmul.f32 %v467, %v660
  %v662 = vperm.slane %v651, 4
  %v663 = vmul.f32 %v471, %v662
  %v664 = vperm.slane %v651, 5
  %v665 = vmul.f32 %v475, %v664
  %v666 = vperm.slane %v651, 6
  %v667 = vmul.f32 %v479, %v666
  %v668 = vperm.slane %v651, 7
  %v669 = vmul.f32 %v483, %v668
  %v670 = vadd.f32 %v655, %v657
  %v671 = vadd.f32 %v659, %v661
  %v672 = vadd.f32 %v663, %v665
  %v673 = vadd.f32 %v667, %v669
  %v674 = vadd.f32 %v670, %v671
  %v675 = vadd.f32 %v672, %v673
  %v676 = vadd.f32 %v674, %v675
  %v677 = vadd.f32 %v653, %v676
  %v678 = vsel %vm67, %v677, -inf
  %v679 = vrot.slane %v678, 4
  %v680 = vmax.f32 %v678, %v679
  %v681 = vrot.slane %v680, 2
  %v682 = vmax.f32 %v680, %v681
  %v683 = vrot.slane %v682, 1
  %v684 = vmax.f32 %v682, %v683
  %vm685 = vcmp.eq.f32.partialorder %v677, %v684
  %v686 = vsel %vm685, %v450, 8
  %v687 = vsel %vm67, %v686, 2147483647
  %v688 = vrot.slane %v687, 4
  %vm689 = vcmp.lt.s32.totalorder %v687, %v688
  %v690 = vsel %vm689, %v687, %v688
  %v691 = vrot.slane %v690, 2
  %vm692 = vcmp.lt.s32.totalorder %v690, %v691
  %v693 = vsel %vm692, %v690, %v691
  %v694 = vrot.slane %v693, 1
  %vm695 = vcmp.lt.s32.totalorder %v693, %v694
  %v696 = vsel %vm695, %v693, %v694
  %vm697 = vcmp.eq.s32.totalorder %v450, %v696
  %v698 = vsel %vm697, 1, 0
  %v699 = vcvt.s32.f32 %v698
  %700 = vst.msk [vmem:[%s6 + $0x5] sm:$0x1] %vm507, %v696
  %v701 = vld [vmem:[%s197] sm:$0xff]
  %v702 = vperm.slane %v699, 0
  %v703 = vmul.f32 %v455, %v702
  %v704 = vperm.slane %v699, 1
  %v705 = vmul.f32 %v459, %v704
  %v706 = vperm.slane %v699, 2
  %v707 = vmul.f32 %v463, %v706
  %v708 = vperm.slane %v699, 3
  %v709 = vmul.f32 %v467, %v708
  %v710 = vperm.slane %v699, 4
  %v711 = vmul.f32 %v471, %v710
  %v712 = vperm.slane %v699, 5
  %v713 = vmul.f32 %v475, %v712
  %v714 = vperm.slane %v699, 6
  %v715 = vmul.f32 %v479, %v714
  %v716 = vperm.slane %v699, 7
  %v717 = vmul.f32 %v483, %v716
  %v718 = vadd.f32 %v703, %v705
  %v719 = vadd.f32 %v707, %v709
  %v720 = vadd.f32 %v711, %v713
  %v721 = vadd.f32 %v715, %v717
  %v722 = vadd.f32 %v718, %v719
  %v723 = vadd.f32 %v720, %v721
  %v724 = vadd.f32 %v722, %v723
  %v725 = vadd.f32 %v701, %v724
  %v726 = vsel %vm67, %v725, -inf
  %v727 = vrot.slane %v726, 4
  %v728 = vmax.f32 %v726, %v727
  %v729 = vrot.slane %v728, 2
  %v730 = vmax.f32 %v728, %v729
  %v731 = vrot.slane %v730, 1
  %v732 = vmax.f32 %v730, %v731
  %vm733 = vcmp.eq.f32.partialorder %v725, %v732
  %v734 = vsel %vm733, %v450, 8
  %v735 = vsel %vm67, %v734, 2147483647
  %v736 = vrot.slane %v735, 4
  %vm737 = vcmp.lt.s32.totalorder %v735, %v736
  %v738 = vsel %vm737, %v735, %v736
  %v739 = vrot.slane %v738, 2
  %vm740 = vcmp.lt.s32.totalorder %v738, %v739
  %v741 = vsel %vm740, %v738, %v739
  %v742 = vrot.slane %v741, 1
  %vm743 = vcmp.lt.s32.totalorder %v741, %v742
  %v744 = vsel %vm743, %v741, %v742
  %vm745 = vcmp.eq.s32.totalorder %v450, %v744
  %v746 = vsel %vm745, 1, 0
  %v747 = vcvt.s32.f32 %v746
  %748 = vst.msk [vmem:[%s6 + $0x4] sm:$0x1] %vm507, %v744
  %v749 = vld [vmem:[%s156] sm:$0xff]
  %v750 = vperm.slane %v747, 0
  %v751 = vmul.f32 %v455, %v750
  %v752 = vperm.slane %v747, 1
  %v753 = vmul.f32 %v459, %v752
  %v754 = vperm.slane %v747, 2
  %v755 = vmul.f32 %v463, %v754
  %v756 = vperm.slane %v747, 3
  %v757 = vmul.f32 %v467, %v756
  %v758 = vperm.slane %v747, 4
  %v759 = vmul.f32 %v471, %v758
  %v760 = vperm.slane %v747, 5
  %v761 = vmul.f32 %v475, %v760
  %v762 = vperm.slane %v747, 6
  %v763 = vmul.f32 %v479, %v762
  %v764 = vperm.slane %v747, 7
  %v765 = vmul.f32 %v483, %v764
  %v766 = vadd.f32 %v751, %v753
  %v767 = vadd.f32 %v755, %v757
  %v768 = vadd.f32 %v759, %v761
  %v769 = vadd.f32 %v763, %v765
  %v770 = vadd.f32 %v766, %v767
  %v771 = vadd.f32 %v768, %v769
  %v772 = vadd.f32 %v770, %v771
  %v773 = vadd.f32 %v749, %v772
  %v774 = vsel %vm67, %v773, -inf
  %v775 = vrot.slane %v774, 4
  %v776 = vmax.f32 %v774, %v775
  %v777 = vrot.slane %v776, 2
  %v778 = vmax.f32 %v776, %v777
  %v779 = vrot.slane %v778, 1
  %v780 = vmax.f32 %v778, %v779
  %vm781 = vcmp.eq.f32.partialorder %v773, %v780
  %v782 = vsel %vm781, %v450, 8
  %v783 = vsel %vm67, %v782, 2147483647
  %v784 = vrot.slane %v783, 4
  %vm785 = vcmp.lt.s32.totalorder %v783, %v784
  %v786 = vsel %vm785, %v783, %v784
  %v787 = vrot.slane %v786, 2
  %vm788 = vcmp.lt.s32.totalorder %v786, %v787
  %v789 = vsel %vm788, %v786, %v787
  %v790 = vrot.slane %v789, 1
  %vm791 = vcmp.lt.s32.totalorder %v789, %v790
  %v792 = vsel %vm791, %v789, %v790
  %vm793 = vcmp.eq.s32.totalorder %v450, %v792
  %v794 = vsel %vm793, 1, 0
  %v795 = vcvt.s32.f32 %v794
  %796 = vst.msk [vmem:[%s6 + $0x3] sm:$0x1] %vm507, %v792
  %v797 = vld [vmem:[%s115] sm:$0xff]
  %v798 = vperm.slane %v795, 0
  %v799 = vmul.f32 %v455, %v798
  %v800 = vperm.slane %v795, 1
  %v801 = vmul.f32 %v459, %v800
  %v802 = vperm.slane %v795, 2
  %v803 = vmul.f32 %v463, %v802
  %v804 = vperm.slane %v795, 3
  %v805 = vmul.f32 %v467, %v804
  %v806 = vperm.slane %v795, 4
  %v807 = vmul.f32 %v471, %v806
  %v808 = vperm.slane %v795, 5
  %v809 = vmul.f32 %v475, %v808
  %v810 = vperm.slane %v795, 6
  %v811 = vmul.f32 %v479, %v810
  %v812 = vperm.slane %v795, 7
  %v813 = vmul.f32 %v483, %v812
  %v814 = vadd.f32 %v799, %v801
  %v815 = vadd.f32 %v803, %v805
  %v816 = vadd.f32 %v807, %v809
  %v817 = vadd.f32 %v811, %v813
  %v818 = vadd.f32 %v814, %v815
  %v819 = vadd.f32 %v816, %v817
  %v820 = vadd.f32 %v818, %v819
  %v821 = vadd.f32 %v797, %v820
  %v822 = vsel %vm67, %v821, -inf
  %v823 = vrot.slane %v822, 4
  %v824 = vmax.f32 %v822, %v823
  %v825 = vrot.slane %v824, 2
  %v826 = vmax.f32 %v824, %v825
  %v827 = vrot.slane %v826, 1
  %v828 = vmax.f32 %v826, %v827
  %vm829 = vcmp.eq.f32.partialorder %v821, %v828
  %v830 = vsel %vm829, %v450, 8
  %v831 = vsel %vm67, %v830, 2147483647
  %v832 = vrot.slane %v831, 4
  %vm833 = vcmp.lt.s32.totalorder %v831, %v832
  %v834 = vsel %vm833, %v831, %v832
  %v835 = vrot.slane %v834, 2
  %vm836 = vcmp.lt.s32.totalorder %v834, %v835
  %v837 = vsel %vm836, %v834, %v835
  %v838 = vrot.slane %v837, 1
  %vm839 = vcmp.lt.s32.totalorder %v837, %v838
  %v840 = vsel %vm839, %v837, %v838
  %vm841 = vcmp.eq.s32.totalorder %v450, %v840
  %v842 = vsel %vm841, 1, 0
  %v843 = vcvt.s32.f32 %v842
  %844 = vst.msk [vmem:[%s6 + $0x2] sm:$0x1] %vm507, %v840
  %v845 = vld [vmem:[%s69] sm:$0xff]
  %v846 = vperm.slane %v843, 0
  %v847 = vmul.f32 %v455, %v846
  %v848 = vperm.slane %v843, 1
  %v849 = vmul.f32 %v459, %v848
  %v850 = vperm.slane %v843, 2
  %v851 = vmul.f32 %v463, %v850
  %v852 = vperm.slane %v843, 3
  %v853 = vmul.f32 %v467, %v852
  %v854 = vperm.slane %v843, 4
  %v855 = vmul.f32 %v471, %v854
  %v856 = vperm.slane %v843, 5
  %v857 = vmul.f32 %v475, %v856
  %v858 = vperm.slane %v843, 6
  %v859 = vmul.f32 %v479, %v858
  %v860 = vperm.slane %v843, 7
  %v861 = vmul.f32 %v483, %v860
  %v862 = vadd.f32 %v847, %v849
  %v863 = vadd.f32 %v851, %v853
  %v864 = vadd.f32 %v855, %v857
  %v865 = vadd.f32 %v859, %v861
  %v866 = vadd.f32 %v862, %v863
  %v867 = vadd.f32 %v864, %v865
  %v868 = vadd.f32 %v866, %v867
  %v869 = vadd.f32 %v845, %v868
  %v870 = vsel %vm67, %v869, -inf
  %v871 = vrot.slane %v870, 4
  %v872 = vmax.f32 %v870, %v871
  %v873 = vrot.slane %v872, 2
  %v874 = vmax.f32 %v872, %v873
  %v875 = vrot.slane %v874, 1
  %v876 = vmax.f32 %v874, %v875
  %vm877 = vcmp.eq.f32.partialorder %v869, %v876
  %v878 = vsel %vm877, %v450, 8
  %v879 = vsel %vm67, %v878, 2147483647
  %v880 = vrot.slane %v879, 4
  %vm881 = vcmp.lt.s32.totalorder %v879, %v880
  %v882 = vsel %vm881, %v879, %v880
  %v883 = vrot.slane %v882, 2
  %vm884 = vcmp.lt.s32.totalorder %v882, %v883
  %v885 = vsel %vm884, %v882, %v883
  %v886 = vrot.slane %v885, 1
  %vm887 = vcmp.lt.s32.totalorder %v885, %v886
  %v888 = vsel %vm887, %v885, %v886
  %vm889 = vcmp.eq.s32.totalorder %v450, %v888
  %v890 = vsel %vm889, 1, 0
  %v891 = vcvt.s32.f32 %v890
  %892 = vst.msk [vmem:[%s6 + $0x1] sm:$0x1] %vm507, %v888
  %v893 = vld [vmem:[%s0] sm:$0xff]
  %v894 = vperm.slane %v891, 0
  %v895 = vmul.f32 %v455, %v894
  %v896 = vperm.slane %v891, 1
  %v897 = vmul.f32 %v459, %v896
  %v898 = vperm.slane %v891, 2
  %v899 = vmul.f32 %v463, %v898
  %v900 = vperm.slane %v891, 3
  %v901 = vmul.f32 %v467, %v900
  %v902 = vperm.slane %v891, 4
  %v903 = vmul.f32 %v471, %v902
  %v904 = vperm.slane %v891, 5
  %v905 = vmul.f32 %v475, %v904
  %v906 = vperm.slane %v891, 6
  %v907 = vmul.f32 %v479, %v906
  %v908 = vperm.slane %v891, 7
  %v909 = vmul.f32 %v483, %v908
  %v910 = vadd.f32 %v895, %v897
  %v911 = vadd.f32 %v899, %v901
  %v912 = vadd.f32 %v903, %v905
  %v913 = vadd.f32 %v907, %v909
  %v914 = vadd.f32 %v910, %v911
  %v915 = vadd.f32 %v912, %v913
  %v916 = vadd.f32 %v914, %v915
  %v917 = vadd.f32 %v893, %v916
  %v918 = vsel %vm67, %v917, -inf
  %v919 = vrot.slane %v918, 4
  %v920 = vmax.f32 %v918, %v919
  %v921 = vrot.slane %v920, 2
  %v922 = vmax.f32 %v920, %v921
  %v923 = vrot.slane %v922, 1
  %v924 = vmax.f32 %v922, %v923
  %vm925 = vcmp.eq.f32.partialorder %v917, %v924
  %v926 = vsel %vm925, %v450, 8
  %v927 = vsel %vm67, %v926, 2147483647
  %v928 = vrot.slane %v927, 4
  %vm929 = vcmp.lt.s32.totalorder %v927, %v928
  %v930 = vsel %vm929, %v927, %v928
  %v931 = vrot.slane %v930, 2
  %vm932 = vcmp.lt.s32.totalorder %v930, %v931
  %v933 = vsel %vm932, %v930, %v931
  %v934 = vrot.slane %v933, 1
  %vm935 = vcmp.lt.s32.totalorder %v933, %v934
  %v936 = vsel %vm935, %v933, %v934
  %937 = vst.msk [vmem:[%s6] sm:$0x1] %vm507, %v936
  // Predicated region
  $region26: #{crf_map.1} parent=0 // pred_check
    _
  $region27: #{crf_map.1} parent=0 // pred_check_branch
    %939 = sbr.rel (0) target = $region29
  $region28: #{crf_map.1} parent=0 // pred_region
    _
  $region29: #{crf_map.1} parent=0 // pred_fallthru
    _
  // Predicated region
  $region30: #{crf_map.1} parent=0 // pred_check
    _
  $region31: #{crf_map.1} parent=0 // pred_check_branch
    %941 = sbr.rel (0) target = $region33
  $region32: #{crf_map.1} parent=0 // pred_region
    _
  $region33: #{crf_map.1} parent=0 // pred_fallthru
    _

</llo_original>
